<compile_context>
chip_gen: v7x
topology: tpu7x:2x2x1
jax: 0.10.0
libtpu: 0.0.40
codegen_flags: <defaults>
</compile_context>

<pallas_src>
import jax
import jax.numpy as jnp
from jax import lax
from jax.experimental import pallas as pl
from jax.experimental.pallas import tpu as pltpu

BN_EPS = 1e-5


def _round_up(n, m):
    return ((n + m - 1) // m) * m


def mlp_kernel(x_ref, w1_ref, w2_ref, w3_ref, aux_ref, b3_ref, o_ref):
    x = x_ref[...]                                           # (G, K_pad)

    b1 = aux_ref[0:1, :]                                     # (1, H) f32
    b2 = aux_ref[1:2, :]
    gamma = aux_ref[2:3, :]
    beta = aux_ref[3:4, :]

    # fc1 + ReLU (MXU, f32 accumulation; padded K columns are exact zeros)
    h1 = jnp.dot(x, w1_ref[...], preferred_element_type=jnp.float32) + b1
    h1 = jnp.maximum(h1, 0.0)                                # (G, H) f32

    # fc2
    h2 = jnp.dot(h1.astype(w2_ref.dtype), w2_ref[...],
                 preferred_element_type=jnp.float32) + b2    # (G, H) f32

    # BatchNorm1d, training mode: batch mean + biased batch variance, all in f32.
    # One pass over h2: sum and sum-of-squares reductions (XLU), EUP rsqrt.
    inv_n = 1.0 / h2.shape[0]
    mean = jnp.sum(h2, axis=0, keepdims=True) * inv_n                 # (1, H)
    mean_sq = jnp.sum(h2 * h2, axis=0, keepdims=True) * inv_n         # (1, H)
    var = jnp.maximum(mean_sq - mean * mean, 0.0)
    scale = gamma * lax.rsqrt(var + BN_EPS)                           # (1, H)
    shift = beta - mean * scale                                       # (1, H)

    # normalize + affine + ReLU folded into a single scale/shift
    h3 = jnp.maximum(h2 * scale + shift, 0.0)                         # (G, H) f32

    # fc3 (output columns >= num_classes are exact zeros: W3 / b3 zero-padded)
    out = jnp.dot(h3.astype(w3_ref.dtype), w3_ref[...],
                  preferred_element_type=jnp.float32) + b3_ref[...]   # (G, C_pad)
    o_ref[...] = out.astype(o_ref.dtype)


def mlp_forward(x, params, *, group_size=None, weights_dtype=jnp.float32):
    """Fused MLP forward.

    group_size: rows per BatchNorm group (default: whole batch == exact PyTorch
    semantics).  Smaller group_size gives per-group BN stats (only use when the
    batch really consists of independent BN groups); must then be a multiple of 8.
    weights_dtype: jnp.bfloat16 halves weight DMA bytes and uses the bf16 MXU path
    on v6e/v7x; bias / BN math stays f32 either way.  Default f32 = exact numerics.
    """
    w1, b1, w2, b2, gamma, beta, w3, b3 = params
    batch, in_features = x.shape
    hidden = w1.shape[1]
    num_classes = w3.shape[1]

    if group_size is None:
        group_size = batch                      # one BN group: matches nn.BatchNorm1d
    assert batch % group_size == 0
    num_groups = batch // group_size

    # --- exact zero-padding for tile / lane alignment (never pads the batch axis) ---
    k_pad = _round_up(in_features, 128)         # fc1 contraction dim
    c_pad = _round_up(num_classes, 128)         # fc3 output lanes
    x_p = jnp.pad(x, ((0, 0), (0, k_pad - in_features)))
    w1_p = jnp.pad(w1, ((0, k_pad - in_features), (0, 0)))
    w3_p = jnp.pad(w3, ((0, 0), (0, c_pad - num_classes)))
    b3_p = jnp.pad(b3, ((0, 0), (0, c_pad - num_classes)))
    w2_p = w2

    # Stack small per-feature vectors into one resident VMEM buffer (f32 always).
    aux = jnp.concatenate([b1, b2, gamma, beta], axis=0)      # (4, hidden) f32

    if weights_dtype != jnp.float32:
        # bf16 weights + activations for the MXU; aux / b3 stay f32 so all
        # elementwise & BN math remains f32.
        x_p = x_p.astype(weights_dtype)
        w1_p = w1_p.astype(weights_dtype)
        w2_p = w2_p.astype(weights_dtype)
        w3_p = w3_p.astype(weights_dtype)

    grid_spec = pltpu.PrefetchScalarGridSpec(
        num_scalar_prefetch=0,
        grid=(num_groups,),
        in_specs=[
            pl.BlockSpec((group_size, k_pad), lambda i: (i, 0)),   # x       (streamed)
            pl.BlockSpec((k_pad, hidden),     lambda i: (0, 0)),   # W1      (resident)
            pl.BlockSpec((hidden, hidden),    lambda i: (0, 0)),   # W2
            pl.BlockSpec((hidden, c_pad),     lambda i: (0, 0)),   # W3
            pl.BlockSpec((4, hidden),         lambda i: (0, 0)),   # b1/b2/gamma/beta
            pl.BlockSpec((1, c_pad),          lambda i: (0, 0)),   # b3
        ],
        out_specs=pl.BlockSpec((group_size, c_pad), lambda i: (i, 0)),
    )

    ins = (x_p, w1_p, w2_p, w3_p, aux, b3_p)
    flops = 2 * batch * (k_pad * hidden + hidden * hidden + hidden * c_pad)
    bytes_accessed = (sum(int(a.size) * a.dtype.itemsize for a in ins)
                      + batch * c_pad * 4)

    out_padded = pl.pallas_call(
        mlp_kernel,
        out_shape=jax.ShapeDtypeStruct((batch, c_pad), jnp.float32),
        grid_spec=grid_spec,
        compiler_params=pltpu.CompilerParams(
            dimension_semantics=("parallel",),   # independent BN groups -> both v7x TCs
            vmem_limit_bytes=32 * 1024 * 1024,
        ),
        cost_estimate=pl.CostEstimate(
            flops=flops,
            transcendentals=num_groups * hidden,  # rsqrt per hidden feature per group
            bytes_accessed=bytes_accessed,
        ),
    )(*ins)

    # Drop the zero-padded classifier lanes (pure wrapper plumbing).
    return out_padded[:, :num_classes]


def init_params(key, input_size=50, hidden_size=512, num_classes=10):
    """Deterministic init, PyTorch-Linear-style uniform bounds.
    Weights stored as (in, out) so the kernel computes x @ W + b."""
    ks = jax.random.split(key, 6)

    def linear(kw, kb, fan_in, fan_out):
        bound = 1.0 / jnp.sqrt(fan_in)
        w = jax.random.uniform(kw, (fan_in, fan_out), jnp.float32, -bound, bound)
        b = jax.random.uniform(kb, (1, fan_out), jnp.float32, -bound, bound)
        return w, b

    w1, b1 = linear(ks[0], ks[1], input_size, hidden_size)
    w2, b2 = linear(ks[2], ks[3], hidden_size, hidden_size)
    w3, b3 = linear(ks[4], ks[5], hidden_size, num_classes)
    gamma = jnp.ones((1, hidden_size), jnp.float32)
    beta = jnp.zeros((1, hidden_size), jnp.float32)
    return (w1, b1, w2, b2, gamma, beta, w3, b3)


def mlp_reference(x, params):
    """Pure-JAX reference (training-mode BN, biased batch variance)."""
    w1, b1, w2, b2, gamma, beta, w3, b3 = params
    h1 = jnp.maximum(x @ w1 + b1, 0.0)
    h2 = h1 @ w2 + b2
    mean = jnp.mean(h2, axis=0, keepdims=True)
    var = jnp.mean((h2 - mean) ** 2, axis=0, keepdims=True)
    hn = (h2 - mean) / jnp.sqrt(var + BN_EPS) * gamma + beta
    h3 = jnp.maximum(hn, 0.0)
    return h3 @ w3 + b3


if __name__ == "__main__":
    key = jax.random.PRNGKey(0)
    k_x, k_p = jax.random.split(key)

    batch, input_size, hidden_size, num_classes = 8, 50, 512, 10
    x = jax.random.normal(k_x, (batch, input_size), jnp.float32)
    params = init_params(k_p, input_size, hidden_size, num_classes)

    out = jax.block_until_ready(mlp_forward(x, params))
    ref = mlp_reference(x, params)

    assert out.shape == (batch, num_classes)
    assert jnp.allclose(out, ref, atol=1e-4, rtol=1e-4)

    print("KERNEL_OK")
</pallas_src>

<mosaic_0001>
module attributes {stable_mosaic.version = 11 : i64} {
  func.func @mlp_kernel(%arg0: i32, %arg1: memref<8x128xf32, #tpu.memory_space<vmem>>, %arg2: memref<128x512xf32, #tpu.memory_space<vmem>>, %arg3: memref<512x512xf32, #tpu.memory_space<vmem>>, %arg4: memref<512x128xf32, #tpu.memory_space<vmem>>, %arg5: memref<4x512xf32, #tpu.memory_space<vmem>>, %arg6: memref<1x128xf32, #tpu.memory_space<vmem>>, %arg7: memref<8x128xf32, #tpu.memory_space<vmem>>) attributes {dimension_semantics = [#tpu.dimension_semantics<parallel>], iteration_bounds = array<i64: 1>, scalar_prefetch = 0 : i64, scratch_operands = 0 : i64, tpu.core_type = #tpu.core_type<tc>, window_params = [{transform_indices = @transform_0, window_bounds = array<i64: 8, 128>}, {pipeline_mode = #tpu.pipeline_mode<synchronous>, transform_indices = @transform_1, window_bounds = array<i64: 128, 512>}, {pipeline_mode = #tpu.pipeline_mode<synchronous>, transform_indices = @transform_2, window_bounds = array<i64: 512, 512>}, {pipeline_mode = #tpu.pipeline_mode<synchronous>, transform_indices = @transform_3, window_bounds = array<i64: 512, 128>}, {pipeline_mode = #tpu.pipeline_mode<synchronous>, transform_indices = @transform_4, window_bounds = array<i64: 4, 512>}, {pipeline_mode = #tpu.pipeline_mode<synchronous>, transform_indices = @transform_5, window_bounds = array<i64: 1, 128>}, {transform_indices = @transform_6, window_bounds = array<i64: 8, 128>}]} {
    %c0 = arith.constant 0 : index
    %c0_0 = arith.constant 0 : index
    %0 = vector.load %arg1[%c0, %c0_0] : memref<8x128xf32, #tpu.memory_space<vmem>>, vector<8x128xf32>
    %c0_1 = arith.constant 0 : index
    %c0_2 = arith.constant 0 : index
    %1 = vector.load %arg5[%c0_1, %c0_2] : memref<4x512xf32, #tpu.memory_space<vmem>>, vector<1x512xf32>
    %c1 = arith.constant 1 : index
    %c0_3 = arith.constant 0 : index
    %2 = vector.load %arg5[%c1, %c0_3] : memref<4x512xf32, #tpu.memory_space<vmem>>, vector<1x512xf32>
    %c2 = arith.constant 2 : index
    %c0_4 = arith.constant 0 : index
    %3 = vector.load %arg5[%c2, %c0_4] : memref<4x512xf32, #tpu.memory_space<vmem>>, vector<1x512xf32>
    %c3 = arith.constant 3 : index
    %c0_5 = arith.constant 0 : index
    %4 = vector.load %arg5[%c3, %c0_5] : memref<4x512xf32, #tpu.memory_space<vmem>>, vector<1x512xf32>
    %c0_6 = arith.constant 0 : index
    %c0_7 = arith.constant 0 : index
    %5 = vector.load %arg2[%c0_6, %c0_7] : memref<128x512xf32, #tpu.memory_space<vmem>>, vector<128x512xf32>
    %cst = arith.constant dense<0.000000e+00> : vector<8x512xf32>
    %6 = tpu.matmul %0, %5, %cst {dimension_numbers = #tpu.dot_dimension_numbers<[1], [0], [0], [1], [0, 0, 1, 1], [], []>} : vector<8x128xf32>, vector<128x512xf32>, vector<8x512xf32> -> vector<8x512xf32>
    %7 = vector.broadcast %1 : vector<1x512xf32> to vector<8x512xf32>
    %8 = arith.addf %6, %7 : vector<8x512xf32>
    %cst_8 = arith.constant 0.000000e+00 : f32
    %9 = vector.broadcast %cst_8 : f32 to vector<8x512xf32>
    %10 = arith.maximumf %8, %9 : vector<8x512xf32>
    %c0_9 = arith.constant 0 : index
    %c0_10 = arith.constant 0 : index
    %11 = vector.load %arg3[%c0_9, %c0_10] : memref<512x512xf32, #tpu.memory_space<vmem>>, vector<512x512xf32>
    %cst_11 = arith.constant dense<0.000000e+00> : vector<8x512xf32>
    %12 = tpu.matmul %10, %11, %cst_11 {dimension_numbers = #tpu.dot_dimension_numbers<[1], [0], [0], [1], [0, 0, 1, 1], [], []>} : vector<8x512xf32>, vector<512x512xf32>, vector<8x512xf32> -> vector<8x512xf32>
    %13 = vector.broadcast %2 : vector<1x512xf32> to vector<8x512xf32>
    %14 = arith.addf %12, %13 : vector<8x512xf32>
    %cst_12 = arith.constant dense<0.000000e+00> : vector<512xf32>
    %15 = vector.multi_reduction <add>, %14, %cst_12 [0] : vector<8x512xf32> to vector<512xf32>
    %16 = vector.shape_cast %15 : vector<512xf32> to vector<1x512xf32>
    %cst_13 = arith.constant 1.250000e-01 : f32
    %17 = vector.broadcast %cst_13 : f32 to vector<1x512xf32>
    %18 = arith.mulf %16, %17 : vector<1x512xf32>
    %19 = arith.mulf %14, %14 : vector<8x512xf32>
    %cst_14 = arith.constant dense<0.000000e+00> : vector<512xf32>
    %20 = vector.multi_reduction <add>, %19, %cst_14 [0] : vector<8x512xf32> to vector<512xf32>
    %21 = vector.shape_cast %20 : vector<512xf32> to vector<1x512xf32>
    %cst_15 = arith.constant 1.250000e-01 : f32
    %22 = vector.broadcast %cst_15 : f32 to vector<1x512xf32>
    %23 = arith.mulf %21, %22 : vector<1x512xf32>
    %24 = arith.mulf %18, %18 : vector<1x512xf32>
    %25 = arith.subf %23, %24 : vector<1x512xf32>
    %cst_16 = arith.constant 0.000000e+00 : f32
    %26 = vector.broadcast %cst_16 : f32 to vector<1x512xf32>
    %27 = arith.maximumf %25, %26 : vector<1x512xf32>
    %cst_17 = arith.constant 9.99999974E-6 : f32
    %28 = vector.broadcast %cst_17 : f32 to vector<1x512xf32>
    %29 = arith.addf %27, %28 : vector<1x512xf32>
    %30 = math.rsqrt %29 : vector<1x512xf32>
    %31 = arith.mulf %3, %30 : vector<1x512xf32>
    %32 = arith.mulf %18, %31 : vector<1x512xf32>
    %33 = arith.subf %4, %32 : vector<1x512xf32>
    %34 = vector.broadcast %31 : vector<1x512xf32> to vector<8x512xf32>
    %35 = arith.mulf %14, %34 : vector<8x512xf32>
    %36 = vector.broadcast %33 : vector<1x512xf32> to vector<8x512xf32>
    %37 = arith.addf %35, %36 : vector<8x512xf32>
    %cst_18 = arith.constant 0.000000e+00 : f32
    %38 = vector.broadcast %cst_18 : f32 to vector<8x512xf32>
    %39 = arith.maximumf %37, %38 : vector<8x512xf32>
    %c0_19 = arith.constant 0 : index
    %c0_20 = arith.constant 0 : index
    %40 = vector.load %arg4[%c0_19, %c0_20] : memref<512x128xf32, #tpu.memory_space<vmem>>, vector<512x128xf32>
    %cst_21 = arith.constant dense<0.000000e+00> : vector<8x128xf32>
    %41 = tpu.matmul %39, %40, %cst_21 {dimension_numbers = #tpu.dot_dimension_numbers<[1], [0], [0], [1], [0, 0, 1, 1], [], []>} : vector<8x512xf32>, vector<512x128xf32>, vector<8x128xf32> -> vector<8x128xf32>
    %c0_22 = arith.constant 0 : index
    %c0_23 = arith.constant 0 : index
    %42 = vector.load %arg6[%c0_22, %c0_23] : memref<1x128xf32, #tpu.memory_space<vmem>>, vector<1x128xf32>
    %43 = vector.broadcast %42 : vector<1x128xf32> to vector<8x128xf32>
    %44 = arith.addf %41, %43 : vector<8x128xf32>
    %c0_24 = arith.constant 0 : index
    %c0_25 = arith.constant 0 : index
    %45 = vector.load %arg7[%c0_24, %c0_25] : memref<8x128xf32, #tpu.memory_space<vmem>>, vector<8x128xf32>
    tpu.vector_store %arg7[%c0_24, %c0_25], %44 {strides = array<i32>} : memref<8x128xf32, #tpu.memory_space<vmem>>, vector<8x128xf32>,
    return
  }
  func.func @transform_0(%arg0: i32) -> (i32, i32) {
    %c0_i32 = arith.constant 0 : i32
    %c0_i32_0 = arith.constant 0 : i32
    return %arg0, %c0_i32 : i32, i32
  }
  func.func @transform_1(%arg0: i32) -> (i32, i32) {
    %c0_i32 = arith.constant 0 : i32
    %c0_i32_0 = arith.constant 0 : i32
    %c0_i32_1 = arith.constant 0 : i32
    return %c0_i32, %c0_i32_0 : i32, i32
  }
  func.func @transform_2(%arg0: i32) -> (i32, i32) {
    %c0_i32 = arith.constant 0 : i32
    %c0_i32_0 = arith.constant 0 : i32
    %c0_i32_1 = arith.constant 0 : i32
    return %c0_i32, %c0_i32_0 : i32, i32
  }
  func.func @transform_3(%arg0: i32) -> (i32, i32) {
    %c0_i32 = arith.constant 0 : i32
    %c0_i32_0 = arith.constant 0 : i32
    %c0_i32_1 = arith.constant 0 : i32
    return %c0_i32, %c0_i32_0 : i32, i32
  }
  func.func @transform_4(%arg0: i32) -> (i32, i32) {
    %c0_i32 = arith.constant 0 : i32
    %c0_i32_0 = arith.constant 0 : i32
    %c0_i32_1 = arith.constant 0 : i32
    return %c0_i32, %c0_i32_0 : i32, i32
  }
  func.func @transform_5(%arg0: i32) -> (i32, i32) {
    %c0_i32 = arith.constant 0 : i32
    %c0_i32_0 = arith.constant 0 : i32
    %c0_i32_1 = arith.constant 0 : i32
    return %c0_i32, %c0_i32_0 : i32, i32
  }
  func.func @transform_6(%arg0: i32) -> (i32, i32) {
    %c0_i32 = arith.constant 0 : i32
    %c0_i32_0 = arith.constant 0 : i32
    return %arg0, %c0_i32 : i32, i32
  }
}

</mosaic_0001>

<llo_original>
// kernel: tpu_custom_call.1
$region0: #{tpu_custom_call.1}
  #allocation0 [shape = 'u32[]', space=smem, size = 0x4, offset = 0x4, fixed_abs, tag = 'smem constant byte address 0x4 - core index']
  #allocation1 [shape = 'u32[144,128]{1,0:T(1,128)}', space=vmem, size = 0x12000, scoped, tag = 'internal scratch']
  %s0 = inlined_call_operand.hbm [shape: f32[8,128], index: 0, kind: input, shape index: {}]
  %s1 = inlined_call_operand.hbm [shape: f32[128,512], index: 1, kind: input, shape index: {}]
  %s2 = inlined_call_operand.hbm [shape: f32[512,512], index: 2, kind: input, shape index: {}]
  %s3 = inlined_call_operand.hbm [shape: f32[512,128], index: 3, kind: input, shape index: {}]
  %s4 = inlined_call_operand.hbm [shape: f32[4,512], index: 4, kind: input, shape index: {}]
  %s5 = inlined_call_operand.vmem [shape: f32[1,128], index: 5, kind: input, shape index: {}]
  %s6 = inlined_call_operand.hbm [shape: f32[8,128], index: 6, kind: output, shape index: {}]
  %s7 = sld [smem:[#allocation0]]
  $region54: #{tpu_custom_call.1} parent=0
    _
  %s9 = ssub.s32 1, %s7
  %s10 = scalar_select 0, %s9, %s7
  $region1: #{tpu_custom_call.1} parent=0
    #allocation2 [shape = 'u8[4096]{0}', space=vmem, size = 0x1000, scoped, tag = 'input window, operand 0, single buffered']
    #allocation3 [shape = 's32[1]{0}', space=sflag, size = 0x4, scoped, tag = 'scoped memory for tpu_custom_call.1']
    #allocation4 [shape = 's32[1]{0}', space=sflag, size = 0x4, scoped, tag = 'scoped memory for tpu_custom_call.1']
    #allocation5 [shape = 'u8[262144]{0}', space=vmem, size = 0x40000, scoped, tag = 'input window, operand 1, single buffered']
    #allocation6 [shape = 's32[1]{0}', space=sflag, size = 0x4, scoped, tag = 'scoped memory for tpu_custom_call.1']
    #allocation7 [shape = 'u8[1048576]{0}', space=vmem, size = 0x100000, scoped, tag = 'input window, operand 2, single buffered']
    #allocation8 [shape = 'u8[262144]{0}', space=vmem, size = 0x40000, scoped, tag = 'input window, operand 3, single buffered']
    #allocation9 [shape = 's32[1]{0}', space=sflag, size = 0x4, scoped, tag = 'scoped memory for tpu_custom_call.1']
    #allocation10 [shape = 'u8[8192]{0}', space=vmem, size = 0x2000, scoped, tag = 'input window, operand 4, single buffered']
    #allocation11 [shape = 'u8[4096]{0}', space=vmem, size = 0x1000, scoped, tag = 'output window, operand 0, single buffered']
    %11 = vsyncpa [#allocation3], 0
    %12 = vsyncpa [#allocation6], 0
    %13 = vsyncpa [#allocation9], 0
    %14 = vsyncpa [#allocation4], 0
    // Predicated region
    $region2: #{tpu_custom_call.1} parent=1 // pred_check
      _
    $region3: #{tpu_custom_call.1} parent=1 // pred_check_branch
      %16 = sbr.rel (0) target = $region5
    $region4: #{tpu_custom_call.1} parent=1 // pred_region
      %s18 = ssub.s32 128, 128
      %19 = vsyncadd [#allocation3], %s18
      %s21 = sshll.u32 [#allocation2], 4
      %s22 = int_to_ptr.vmem [resolvable:$true] %s21
      %24 = dma.hbm_to_vmem [thread:$0]  %s0, 128, %s22, [#allocation3]
    $region5: #{tpu_custom_call.1} parent=1 // pred_fallthru
      _
    // Predicated region
    $region6: #{tpu_custom_call.1} parent=1 // pred_check
      _
    $region7: #{tpu_custom_call.1} parent=1 // pred_check_branch
      %26 = sbr.rel (0) target = $region9
    $region8: #{tpu_custom_call.1} parent=1 // pred_region
      %s28 = ssub.s32 8192, 8192
      %29 = vsyncadd [#allocation6], %s28
      %s30 = sshll.u32 [#allocation5], 4
      %s31 = int_to_ptr.vmem [resolvable:$true] %s30
      %36 = dma.hbm_to_vmem [thread:$0]  %s1, 8192, %s31, [#allocation6], 512, 512, 32
    $region9: #{tpu_custom_call.1} parent=1 // pred_fallthru
      _
    // Predicated region
    $region10: #{tpu_custom_call.1} parent=1 // pred_check
      _
    $region11: #{tpu_custom_call.1} parent=1 // pred_check_branch
      %38 = sbr.rel (0) target = $region13
    $region12: #{tpu_custom_call.1} parent=1 // pred_region
      %s40 = ssub.s32 32768, 32768
      %41 = vsyncadd [#allocation6], %s40
      %s42 = sshll.u32 [#allocation7], 4
      %s43 = int_to_ptr.vmem [resolvable:$true] %s42
      %48 = dma.hbm_to_vmem [thread:$0]  %s2, 32768, %s43, [#allocation6], 512, 512, 32
    $region13: #{tpu_custom_call.1} parent=1 // pred_fallthru
      _
    // Predicated region
    $region14: #{tpu_custom_call.1} parent=1 // pred_check
      _
    $region15: #{tpu_custom_call.1} parent=1 // pred_check_branch
      %50 = sbr.rel (0) target = $region17
    $region16: #{tpu_custom_call.1} parent=1 // pred_region
      %s52 = ssub.s32 8192, 8192
      %53 = vsyncadd [#allocation9], %s52
      %s54 = sshll.u32 [#allocation8], 4
      %s55 = int_to_ptr.vmem [resolvable:$true] %s54
      %60 = dma.hbm_to_vmem [thread:$0]  %s3, 8192, %s55, [#allocation9], 128, 128, 8
    $region17: #{tpu_custom_call.1} parent=1 // pred_fallthru
      _
    // Predicated region
    $region18: #{tpu_custom_call.1} parent=1 // pred_check
      _
    $region19: #{tpu_custom_call.1} parent=1 // pred_check_branch
      %62 = sbr.rel (0) target = $region21
    $region20: #{tpu_custom_call.1} parent=1 // pred_region
      %s64 = ssub.s32 256, 256
      %65 = vsyncadd [#allocation9], %s64
      %s67 = sshll.u32 [#allocation10], 4
      %s68 = int_to_ptr.vmem [resolvable:$true] %s67
      %70 = dma.hbm_to_vmem [thread:$0]  %s4, 256, %s68, [#allocation9]
    $region21: #{tpu_custom_call.1} parent=1 // pred_fallthru
      _
    // Predicated region
    $region22: #{tpu_custom_call.1} parent=1 // pred_check
      _
    $region23: #{tpu_custom_call.1} parent=1 // pred_check_branch
      %72 = sbr.rel (0) target = $region25
    $region24: #{tpu_custom_call.1} parent=1 // pred_region
      _
    $region25: #{tpu_custom_call.1} parent=1 // pred_fallthru
      _
    // Predicated region
    $region26: #{tpu_custom_call.1} parent=1 // pred_check
      _
    $region27: #{tpu_custom_call.1} parent=1 // pred_check_branch
      %74 = sbr.rel (0) target = $region29
    $region28: #{tpu_custom_call.1} parent=1 // pred_region
      %75 = dma.done [#allocation3], 128
    $region29: #{tpu_custom_call.1} parent=1 // pred_fallthru
      _
    // Predicated region
    $region30: #{tpu_custom_call.1} parent=1 // pred_check
      _
    $region31: #{tpu_custom_call.1} parent=1 // pred_check_branch
      %77 = sbr.rel (0) target = $region33
    $region32: #{tpu_custom_call.1} parent=1 // pred_region
      %78 = dma.done [#allocation6], 8192
    $region33: #{tpu_custom_call.1} parent=1 // pred_fallthru
      _
    // Predicated region
    $region34: #{tpu_custom_call.1} parent=1 // pred_check
      _
    $region35: #{tpu_custom_call.1} parent=1 // pred_check_branch
      %80 = sbr.rel (0) target = $region37
    $region36: #{tpu_custom_call.1} parent=1 // pred_region
      %81 = dma.done [#allocation6], 32768
    $region37: #{tpu_custom_call.1} parent=1 // pred_fallthru
      _
    // Predicated region
    $region38: #{tpu_custom_call.1} parent=1 // pred_check
      _
    $region39: #{tpu_custom_call.1} parent=1 // pred_check_branch
      %83 = sbr.rel (0) target = $region41
    $region40: #{tpu_custom_call.1} parent=1 // pred_region
      %84 = dma.done [#allocation9], 8192
    $region41: #{tpu_custom_call.1} parent=1 // pred_fallthru
      _
    // Predicated region
    $region42: #{tpu_custom_call.1} parent=1 // pred_check
      _
    $region43: #{tpu_custom_call.1} parent=1 // pred_check_branch
      %86 = sbr.rel (0) target = $region45
    $region44: #{tpu_custom_call.1} parent=1 // pred_region
      %87 = dma.done [#allocation9], 256
    $region45: #{tpu_custom_call.1} parent=1 // pred_fallthru
      _
    %v88 = vld [vmem:[#allocation2] sm:$0xff]
    %v89 = vld [vmem:[#allocation10] ss:$4 sm:$0xf]
    %s90 = scalar_lea.vmem [#allocation10], 1
    %v91 = vld [vmem:[%s90] ss:$4 sm:$0xf]
    %s92 = scalar_lea.vmem [#allocation10], 2
    %v93 = vld [vmem:[%s92] ss:$4 sm:$0xf]
    %s94 = scalar_lea.vmem [#allocation10], 3
    %v95 = vld [vmem:[%s94] ss:$4 sm:$0xf]
    %v96 = vld [vmem:[#allocation5] sm:$0xff]
    %v97 = vld [vmem:[#allocation5 + $0x8] sm:$0xff]
    %v98 = vld [vmem:[#allocation5 + $0x10] sm:$0xff]
    %v99 = vld [vmem:[#allocation5 + $0x18] sm:$0xff]
    %v100 = vld [vmem:[#allocation5 + $0x20] sm:$0xff]
    %v101 = vld [vmem:[#allocation5 + $0x28] sm:$0xff]
    %v102 = vld [vmem:[#allocation5 + $0x30] sm:$0xff]
    %v103 = vld [vmem:[#allocation5 + $0x38] sm:$0xff]
    %v104 = vld [vmem:[#allocation5 + $0x40] sm:$0xff]
    %v105 = vld [vmem:[#allocation5 + $0x48] sm:$0xff]
    %v106 = vld [vmem:[#allocation5 + $0x50] sm:$0xff]
    %v107 = vld [vmem:[#allocation5 + $0x58] sm:$0xff]
    %v108 = vld [vmem:[#allocation5 + $0x60] sm:$0xff]
    %v109 = vld [vmem:[#allocation5 + $0x68] sm:$0xff]
    %v110 = vld [vmem:[#allocation5 + $0x70] sm:$0xff]
    %v111 = vld [vmem:[#allocation5 + $0x78] sm:$0xff]
    %v112 = vld [vmem:[#allocation5 + $0x80] sm:$0xff]
    %v113 = vld [vmem:[#allocation5 + $0x88] sm:$0xff]
    %v114 = vld [vmem:[#allocation5 + $0x90] sm:$0xff]
    %v115 = vld [vmem:[#allocation5 + $0x98] sm:$0xff]
    %v116 = vld [vmem:[#allocation5 + $0xa0] sm:$0xff]
    %v117 = vld [vmem:[#allocation5 + $0xa8] sm:$0xff]
    %v118 = vld [vmem:[#allocation5 + $0xb0] sm:$0xff]
    %v119 = vld [vmem:[#allocation5 + $0xb8] sm:$0xff]
    %v120 = vld [vmem:[#allocation5 + $0xc0] sm:$0xff]
    %v121 = vld [vmem:[#allocation5 + $0xc8] sm:$0xff]
    %v122 = vld [vmem:[#allocation5 + $0xd0] sm:$0xff]
    %v123 = vld [vmem:[#allocation5 + $0xd8] sm:$0xff]
    %v124 = vld [vmem:[#allocation5 + $0xe0] sm:$0xff]
    %v125 = vld [vmem:[#allocation5 + $0xe8] sm:$0xff]
    %v126 = vld [vmem:[#allocation5 + $0xf0] sm:$0xff]
    %v127 = vld [vmem:[#allocation5 + $0xf8] sm:$0xff]
    %v128 = vld [vmem:[#allocation5 + $0x100] sm:$0xff]
    %v129 = vld [vmem:[#allocation5 + $0x108] sm:$0xff]
    %v130 = vld [vmem:[#allocation5 + $0x110] sm:$0xff]
    %v131 = vld [vmem:[#allocation5 + $0x118] sm:$0xff]
    %v132 = vld [vmem:[#allocation5 + $0x120] sm:$0xff]
    %v133 = vld [vmem:[#allocation5 + $0x128] sm:$0xff]
    %v134 = vld [vmem:[#allocation5 + $0x130] sm:$0xff]
    %v135 = vld [vmem:[#allocation5 + $0x138] sm:$0xff]
    %v136 = vld [vmem:[#allocation5 + $0x140] sm:$0xff]
    %v137 = vld [vmem:[#allocation5 + $0x148] sm:$0xff]
    %v138 = vld [vmem:[#allocation5 + $0x150] sm:$0xff]
    %v139 = vld [vmem:[#allocation5 + $0x158] sm:$0xff]
    %v140 = vld [vmem:[#allocation5 + $0x160] sm:$0xff]
    %v141 = vld [vmem:[#allocation5 + $0x168] sm:$0xff]
    %v142 = vld [vmem:[#allocation5 + $0x170] sm:$0xff]
    %v143 = vld [vmem:[#allocation5 + $0x178] sm:$0xff]
    %v144 = vld [vmem:[#allocation5 + $0x180] sm:$0xff]
    %v145 = vld [vmem:[#allocation5 + $0x188] sm:$0xff]
    %v146 = vld [vmem:[#allocation5 + $0x190] sm:$0xff]
    %v147 = vld [vmem:[#allocation5 + $0x198] sm:$0xff]
    %v148 = vld [vmem:[#allocation5 + $0x1a0] sm:$0xff]
    %v149 = vld [vmem:[#allocation5 + $0x1a8] sm:$0xff]
    %v150 = vld [vmem:[#allocation5 + $0x1b0] sm:$0xff]
    %v151 = vld [vmem:[#allocation5 + $0x1b8] sm:$0xff]
    %v152 = vld [vmem:[#allocation5 + $0x1c0] sm:$0xff]
    %v153 = vld [vmem:[#allocation5 + $0x1c8] sm:$0xff]
    %v154 = vld [vmem:[#allocation5 + $0x1d0] sm:$0xff]
    %v155 = vld [vmem:[#allocation5 + $0x1d8] sm:$0xff]
    %v156 = vld [vmem:[#allocation5 + $0x1e0] sm:$0xff]
    %v157 = vld [vmem:[#allocation5 + $0x1e8] sm:$0xff]
    %v158 = vld [vmem:[#allocation5 + $0x1f0] sm:$0xff]
    %v159 = vld [vmem:[#allocation5 + $0x1f8] sm:$0xff]
    %v161 = vlaneseq
    %v162 = vshrl.u32 %v161, 7
    %v163 = vsub.s32 0, %v162
    %v164 = vrot.slane %v89, %v163
    %v165 = vlaneseq
    %v166 = vshrl.u32 %v165, 7
    %v167 = vsub.s32 1, %v166
    %v168 = vrot.slane %v89, %v167
    %v169 = vlaneseq
    %v170 = vshrl.u32 %v169, 7
    %v171 = vsub.s32 2, %v170
    %v172 = vrot.slane %v89, %v171
    %v173 = vlaneseq
    %v174 = vshrl.u32 %v173, 7
    %v175 = vsub.s32 3, %v174
    %v176 = vrot.slane %v89, %v175
    %181 = vmatprep.subr.mxu0 %v97
    %182 = vmatpush1.msra.mxu0 %v96
    %183 = vmatprep.subr.mxu0 %v101
    %184 = vmatpush1.msra.mxu0 %v100
    %185 = vmatprep.subr.mxu0 %v105
    %186 = vmatpush1.msra.mxu0 %v104
    %187 = vmatprep.subr.mxu0 %v109
    %188 = vmatpush1.msra.mxu0 %v108
    %189 = vmatprep.subr.mxu0 %v113
    %190 = vmatpush1.msra.mxu0 %v112
    %191 = vmatprep.subr.mxu0 %v117
    %192 = vmatpush1.msra.mxu0 %v116
    %193 = vmatprep.subr.mxu0 %v121
    %194 = vmatpush1.msra.mxu0 %v120
    %195 = vmatprep.subr.mxu0 %v125
    %196 = vmatpush1.msra.mxu0 %v124
    %197 = vmatprep.subr.mxu0 %v129
    %198 = vmatpush1.msra.mxu0 %v128
    %199 = vmatprep.subr.mxu0 %v133
    %200 = vmatpush1.msra.mxu0 %v132
    %201 = vmatprep.subr.mxu0 %v137
    %202 = vmatpush1.msra.mxu0 %v136
    %203 = vmatprep.subr.mxu0 %v141
    %204 = vmatpush1.msra.mxu0 %v140
    %205 = vmatprep.subr.mxu0 %v145
    %206 = vmatpush1.msra.mxu0 %v144
    %207 = vmatprep.subr.mxu0 %v149
    %208 = vmatpush1.msra.mxu0 %v148
    %209 = vmatprep.subr.mxu0 %v153
    %210 = vmatpush1.msra.mxu0 %v152
    %211 = vmatprep.subr.mxu0 %v157
    %212 = vmatpush1.msra.mxu0 %v156
    %213 = vmatprep.subr.mxu0 0.0
    %214 = vmatpush1.msra.mxu0 0.0
    %215 = vmatprep.subr.mxu0 0.0
    %216 = vmatpush1.msra.mxu0 0.0
    %217 = vmatprep.subr.mxu0 0.0
    %218 = vmatpush1.msra.mxu0 0.0
    %219 = vmatprep.subr.mxu0 0.0
    %220 = vmatpush1.msra.mxu0 0.0
    %221 = vmatprep.subr.mxu0 0.0
    %222 = vmatpush1.msra.mxu0 0.0
    %223 = vmatprep.subr.mxu0 0.0
    %224 = vmatpush1.msra.mxu0 0.0
    %225 = vmatprep.subr.mxu0 0.0
    %226 = vmatpush1.msra.mxu0 0.0
    %227 = vmatprep.subr.mxu0 0.0
    %228 = vmatpush1.msra.mxu0 0.0
    %229 = vmatprep.subr.mxu0 0.0
    %230 = vmatpush1.msra.mxu0 0.0
    %231 = vmatprep.subr.mxu0 0.0
    %232 = vmatpush1.msra.mxu0 0.0
    %233 = vmatprep.subr.mxu0 0.0
    %234 = vmatpush1.msra.mxu0 0.0
    %235 = vmatprep.subr.mxu0 0.0
    %236 = vmatpush1.msra.mxu0 0.0
    %237 = vmatprep.subr.mxu0 0.0
    %238 = vmatpush1.msra.mxu0 0.0
    %239 = vmatprep.subr.mxu0 0.0
    %240 = vmatpush1.msra.mxu0 0.0
    %241 = vmatprep.subr.mxu0 0.0
    %242 = vmatpush1.msra.mxu0 0.0
    %243 = vmatprep.subr.mxu0 0.0
    %244 = vmatpush1.msra.mxu0 0.0
    %245 = vmatprep.mubr.f32.mxu0 0.0
    %246 = vmatmul.mubr.f32.gmra.mrb[0].mxu0 %v88
    %v247 = vpop.f32.mrb[0].mxu0
    %v248 = vadd.f32 %v164, %v247
    %v249 = vpop.f32.mrb[0].mxu0
    %v250 = vadd.f32 %v168, %v249
    %251 = vdwg.mxu0
    %252 = vmatprep.subr.mxu0 %v99
    %253 = vmatpush1.msra.mxu0 %v98
    %254 = vmatprep.subr.mxu0 %v103
    %255 = vmatpush1.msra.mxu0 %v102
    %256 = vmatprep.subr.mxu0 %v107
    %257 = vmatpush1.msra.mxu0 %v106
    %258 = vmatprep.subr.mxu0 %v111
    %259 = vmatpush1.msra.mxu0 %v110
    %260 = vmatprep.subr.mxu0 %v115
    %261 = vmatpush1.msra.mxu0 %v114
    %262 = vmatprep.subr.mxu0 %v119
    %263 = vmatpush1.msra.mxu0 %v118
    %264 = vmatprep.subr.mxu0 %v123
    %265 = vmatpush1.msra.mxu0 %v122
    %266 = vmatprep.subr.mxu0 %v127
    %267 = vmatpush1.msra.mxu0 %v126
    %268 = vmatprep.subr.mxu0 %v131
    %269 = vmatpush1.msra.mxu0 %v130
    %270 = vmatprep.subr.mxu0 %v135
    %271 = vmatpush1.msra.mxu0 %v134
    %272 = vmatprep.subr.mxu0 %v139
    %273 = vmatpush1.msra.mxu0 %v138
    %274 = vmatprep.subr.mxu0 %v143
    %275 = vmatpush1.msra.mxu0 %v142
    %276 = vmatprep.subr.mxu0 %v147
    %277 = vmatpush1.msra.mxu0 %v146
    %278 = vmatprep.subr.mxu0 %v151
    %279 = vmatpush1.msra.mxu0 %v150
    %280 = vmatprep.subr.mxu0 %v155
    %281 = vmatpush1.msra.mxu0 %v154
    %282 = vmatprep.subr.mxu0 %v159
    %283 = vmatpush1.msra.mxu0 %v158
    %284 = vmatprep.subr.mxu0 0.0
    %285 = vmatpush1.msra.mxu0 0.0
    %286 = vmatprep.subr.mxu0 0.0
    %287 = vmatpush1.msra.mxu0 0.0
    %288 = vmatprep.subr.mxu0 0.0
    %289 = vmatpush1.msra.mxu0 0.0
    %290 = vmatprep.subr.mxu0 0.0
    %291 = vmatpush1.msra.mxu0 0.0
    %292 = vmatprep.subr.mxu0 0.0
    %293 = vmatpush1.msra.mxu0 0.0
    %294 = vmatprep.subr.mxu0 0.0
    %295 = vmatpush1.msra.mxu0 0.0
    %296 = vmatprep.subr.mxu0 0.0
    %297 = vmatpush1.msra.mxu0 0.0
    %298 = vmatprep.subr.mxu0 0.0
    %299 = vmatpush1.msra.mxu0 0.0
    %300 = vmatprep.subr.mxu0 0.0
    %301 = vmatpush1.msra.mxu0 0.0
    %302 = vmatprep.subr.mxu0 0.0
    %303 = vmatpush1.msra.mxu0 0.0
    %304 = vmatprep.subr.mxu0 0.0
    %305 = vmatpush1.msra.mxu0 0.0
    %306 = vmatprep.subr.mxu0 0.0
    %307 = vmatpush1.msra.mxu0 0.0
    %308 = vmatprep.subr.mxu0 0.0
    %309 = vmatpush1.msra.mxu0 0.0
    %310 = vmatprep.subr.mxu0 0.0
    %311 = vmatpush1.msra.mxu0 0.0
    %312 = vmatprep.subr.mxu0 0.0
    %313 = vmatpush1.msra.mxu0 0.0
    %314 = vmatprep.subr.mxu0 0.0
    %315 = vmatpush1.msra.mxu0 0.0
    %316 = vmatprep.mubr.f32.mxu0 0.0
    %317 = vmatmul.mubr.f32.gmra.mrb[0].mxu0 %v88
    %v318 = vpop.f32.mrb[0].mxu0
    %v319 = vadd.f32 %v172, %v318
    %v320 = vpop.f32.mrb[0].mxu0
    %v321 = vadd.f32 %v176, %v320
    %322 = vdwg.mxu0
    %v323 = vmax.f32 %v248, 0.0
    %v324 = vmax.f32 %v250, 0.0
    %v325 = vmax.f32 %v319, 0.0
    %v326 = vmax.f32 %v321, 0.0
    %v327 = vld [vmem:[#allocation7] sm:$0xff]
    %v328 = vld [vmem:[#allocation7 + $0x8] sm:$0xff]
    %v329 = vld [vmem:[#allocation7 + $0x10] sm:$0xff]
    %v330 = vld [vmem:[#allocation7 + $0x18] sm:$0xff]
    %v331 = vld [vmem:[#allocation7 + $0x20] sm:$0xff]
    %v332 = vld [vmem:[#allocation7 + $0x28] sm:$0xff]
    %v333 = vld [vmem:[#allocation7 + $0x30] sm:$0xff]
    %v334 = vld [vmem:[#allocation7 + $0x38] sm:$0xff]
    %v335 = vld [vmem:[#allocation7 + $0x40] sm:$0xff]
    %v336 = vld [vmem:[#allocation7 + $0x48] sm:$0xff]
    %v337 = vld [vmem:[#allocation7 + $0x50] sm:$0xff]
    %v338 = vld [vmem:[#allocation7 + $0x58] sm:$0xff]
    %v339 = vld [vmem:[#allocation7 + $0x60] sm:$0xff]
    %v340 = vld [vmem:[#allocation7 + $0x68] sm:$0xff]
    %v341 = vld [vmem:[#allocation7 + $0x70] sm:$0xff]
    %v342 = vld [vmem:[#allocation7 + $0x78] sm:$0xff]
    %v343 = vld [vmem:[#allocation7 + $0x80] sm:$0xff]
    %v344 = vld [vmem:[#allocation7 + $0x88] sm:$0xff]
    %v345 = vld [vmem:[#allocation7 + $0x90] sm:$0xff]
    %v346 = vld [vmem:[#allocation7 + $0x98] sm:$0xff]
    %v347 = vld [vmem:[#allocation7 + $0xa0] sm:$0xff]
    %v348 = vld [vmem:[#allocation7 + $0xa8] sm:$0xff]
    %v349 = vld [vmem:[#allocation7 + $0xb0] sm:$0xff]
    %v350 = vld [vmem:[#allocation7 + $0xb8] sm:$0xff]
    %v351 = vld [vmem:[#allocation7 + $0xc0] sm:$0xff]
    %v352 = vld [vmem:[#allocation7 + $0xc8] sm:$0xff]
    %v353 = vld [vmem:[#allocation7 + $0xd0] sm:$0xff]
    %v354 = vld [vmem:[#allocation7 + $0xd8] sm:$0xff]
    %v355 = vld [vmem:[#allocation7 + $0xe0] sm:$0xff]
    %v356 = vld [vmem:[#allocation7 + $0xe8] sm:$0xff]
    %v357 = vld [vmem:[#allocation7 + $0xf0] sm:$0xff]
    %v358 = vld [vmem:[#allocation7 + $0xf8] sm:$0xff]
    %v359 = vld [vmem:[#allocation7 + $0x100] sm:$0xff]
    %v360 = vld [vmem:[#allocation7 + $0x108] sm:$0xff]
    %v361 = vld [vmem:[#allocation7 + $0x110] sm:$0xff]
    %v362 = vld [vmem:[#allocation7 + $0x118] sm:$0xff]
    %v363 = vld [vmem:[#allocation7 + $0x120] sm:$0xff]
    %v364 = vld [vmem:[#allocation7 + $0x128] sm:$0xff]
    %v365 = vld [vmem:[#allocation7 + $0x130] sm:$0xff]
    %v366 = vld [vmem:[#allocation7 + $0x138] sm:$0xff]
    %v367 = vld [vmem:[#allocation7 + $0x140] sm:$0xff]
    %v368 = vld [vmem:[#allocation7 + $0x148] sm:$0xff]
    %v369 = vld [vmem:[#allocation7 + $0x150] sm:$0xff]
    %v370 = vld [vmem:[#allocation7 + $0x158] sm:$0xff]
    %v371 = vld [vmem:[#allocation7 + $0x160] sm:$0xff]
    %v372 = vld [vmem:[#allocation7 + $0x168] sm:$0xff]
    %v373 = vld [vmem:[#allocation7 + $0x170] sm:$0xff]
    %v374 = vld [vmem:[#allocation7 + $0x178] sm:$0xff]
    %v375 = vld [vmem:[#allocation7 + $0x180] sm:$0xff]
    %v376 = vld [vmem:[#allocation7 + $0x188] sm:$0xff]
    %v377 = vld [vmem:[#allocation7 + $0x190] sm:$0xff]
    %v378 = vld [vmem:[#allocation7 + $0x198] sm:$0xff]
    %v379 = vld [vmem:[#allocation7 + $0x1a0] sm:$0xff]
    %v380 = vld [vmem:[#allocation7 + $0x1a8] sm:$0xff]
    %v381 = vld [vmem:[#allocation7 + $0x1b0] sm:$0xff]
    %v382 = vld [vmem:[#allocation7 + $0x1b8] sm:$0xff]
    %v383 = vld [vmem:[#allocation7 + $0x1c0] sm:$0xff]
    %v384 = vld [vmem:[#allocation7 + $0x1c8] sm:$0xff]
    %v385 = vld [vmem:[#allocation7 + $0x1d0] sm:$0xff]
    %v386 = vld [vmem:[#allocation7 + $0x1d8] sm:$0xff]
    %v387 = vld [vmem:[#allocation7 + $0x1e0] sm:$0xff]
    %v388 = vld [vmem:[#allocation7 + $0x1e8] sm:$0xff]
    %v389 = vld [vmem:[#allocation7 + $0x1f0] sm:$0xff]
    %v390 = vld [vmem:[#allocation7 + $0x1f8] sm:$0xff]
    %v391 = vld [vmem:[#allocation7 + $0x200] sm:$0xff]
    %v392 = vld [vmem:[#allocation7 + $0x208] sm:$0xff]
    %v393 = vld [vmem:[#allocation7 + $0x210] sm:$0xff]
    %v394 = vld [vmem:[#allocation7 + $0x218] sm:$0xff]
    %v395 = vld [vmem:[#allocation7 + $0x220] sm:$0xff]
    %v396 = vld [vmem:[#allocation7 + $0x228] sm:$0xff]
    %v397 = vld [vmem:[#allocation7 + $0x230] sm:$0xff]
    %v398 = vld [vmem:[#allocation7 + $0x238] sm:$0xff]
    %v399 = vld [vmem:[#allocation7 + $0x240] sm:$0xff]
    %v400 = vld [vmem:[#allocation7 + $0x248] sm:$0xff]
    %v401 = vld [vmem:[#allocation7 + $0x250] sm:$0xff]
    %v402 = vld [vmem:[#allocation7 + $0x258] sm:$0xff]
    %v403 = vld [vmem:[#allocation7 + $0x260] sm:$0xff]
    %v404 = vld [vmem:[#allocation7 + $0x268] sm:$0xff]
    %v405 = vld [vmem:[#allocation7 + $0x270] sm:$0xff]
    %v406 = vld [vmem:[#allocation7 + $0x278] sm:$0xff]
    %v407 = vld [vmem:[#allocation7 + $0x280] sm:$0xff]
    %v408 = vld [vmem:[#allocation7 + $0x288] sm:$0xff]
    %v409 = vld [vmem:[#allocation7 + $0x290] sm:$0xff]
    %v410 = vld [vmem:[#allocation7 + $0x298] sm:$0xff]
    %v411 = vld [vmem:[#allocation7 + $0x2a0] sm:$0xff]
    %v412 = vld [vmem:[#allocation7 + $0x2a8] sm:$0xff]
    %v413 = vld [vmem:[#allocation7 + $0x2b0] sm:$0xff]
    %v414 = vld [vmem:[#allocation7 + $0x2b8] sm:$0xff]
    %v415 = vld [vmem:[#allocation7 + $0x2c0] sm:$0xff]
    %v416 = vld [vmem:[#allocation7 + $0x2c8] sm:$0xff]
    %v417 = vld [vmem:[#allocation7 + $0x2d0] sm:$0xff]
    %v418 = vld [vmem:[#allocation7 + $0x2d8] sm:$0xff]
    %v419 = vld [vmem:[#allocation7 + $0x2e0] sm:$0xff]
    %v420 = vld [vmem:[#allocation7 + $0x2e8] sm:$0xff]
    %v421 = vld [vmem:[#allocation7 + $0x2f0] sm:$0xff]
    %v422 = vld [vmem:[#allocation7 + $0x2f8] sm:$0xff]
    %v423 = vld [vmem:[#allocation7 + $0x300] sm:$0xff]
    %v424 = vld [vmem:[#allocation7 + $0x308] sm:$0xff]
    %v425 = vld [vmem:[#allocation7 + $0x310] sm:$0xff]
    %v426 = vld [vmem:[#allocation7 + $0x318] sm:$0xff]
    %v427 = vld [vmem:[#allocation7 + $0x320] sm:$0xff]
    %v428 = vld [vmem:[#allocation7 + $0x328] sm:$0xff]
    %v429 = vld [vmem:[#allocation7 + $0x330] sm:$0xff]
    %v430 = vld [vmem:[#allocation7 + $0x338] sm:$0xff]
    %v431 = vld [vmem:[#allocation7 + $0x340] sm:$0xff]
    %v432 = vld [vmem:[#allocation7 + $0x348] sm:$0xff]
    %v433 = vld [vmem:[#allocation7 + $0x350] sm:$0xff]
    %v434 = vld [vmem:[#allocation7 + $0x358] sm:$0xff]
    %v435 = vld [vmem:[#allocation7 + $0x360] sm:$0xff]
    %v436 = vld [vmem:[#allocation7 + $0x368] sm:$0xff]
    %v437 = vld [vmem:[#allocation7 + $0x370] sm:$0xff]
    %v438 = vld [vmem:[#allocation7 + $0x378] sm:$0xff]
    %v439 = vld [vmem:[#allocation7 + $0x380] sm:$0xff]
    %v440 = vld [vmem:[#allocation7 + $0x388] sm:$0xff]
    %v441 = vld [vmem:[#allocation7 + $0x390] sm:$0xff]
    %v442 = vld [vmem:[#allocation7 + $0x398] sm:$0xff]
    %v443 = vld [vmem:[#allocation7 + $0x3a0] sm:$0xff]
    %v444 = vld [vmem:[#allocation7 + $0x3a8] sm:$0xff]
    %v445 = vld [vmem:[#allocation7 + $0x3b0] sm:$0xff]
    %v446 = vld [vmem:[#allocation7 + $0x3b8] sm:$0xff]
    %v447 = vld [vmem:[#allocation7 + $0x3c0] sm:$0xff]
    %v448 = vld [vmem:[#allocation7 + $0x3c8] sm:$0xff]
    %v449 = vld [vmem:[#allocation7 + $0x3d0] sm:$0xff]
    %v450 = vld [vmem:[#allocation7 + $0x3d8] sm:$0xff]
    %v451 = vld [vmem:[#allocation7 + $0x3e0] sm:$0xff]
    %v452 = vld [vmem:[#allocation7 + $0x3e8] sm:$0xff]
    %v453 = vld [vmem:[#allocation7 + $0x3f0] sm:$0xff]
    %v454 = vld [vmem:[#allocation7 + $0x3f8] sm:$0xff]
    %v455 = vld [vmem:[#allocation7 + $0x400] sm:$0xff]
    %v456 = vld [vmem:[#allocation7 + $0x408] sm:$0xff]
    %v457 = vld [vmem:[#allocation7 + $0x410] sm:$0xff]
    %v458 = vld [vmem:[#allocation7 + $0x418] sm:$0xff]
    %v459 = vld [vmem:[#allocation7 + $0x420] sm:$0xff]
    %v460 = vld [vmem:[#allocation7 + $0x428] sm:$0xff]
    %v461 = vld [vmem:[#allocation7 + $0x430] sm:$0xff]
    %v462 = vld [vmem:[#allocation7 + $0x438] sm:$0xff]
    %v463 = vld [vmem:[#allocation7 + $0x440] sm:$0xff]
    %v464 = vld [vmem:[#allocation7 + $0x448] sm:$0xff]
    %v465 = vld [vmem:[#allocation7 + $0x450] sm:$0xff]
    %v466 = vld [vmem:[#allocation7 + $0x458] sm:$0xff]
    %v467 = vld [vmem:[#allocation7 + $0x460] sm:$0xff]
    %v468 = vld [vmem:[#allocation7 + $0x468] sm:$0xff]
    %v469 = vld [vmem:[#allocation7 + $0x470] sm:$0xff]
    %v470 = vld [vmem:[#allocation7 + $0x478] sm:$0xff]
    %v471 = vld [vmem:[#allocation7 + $0x480] sm:$0xff]
    %v472 = vld [vmem:[#allocation7 + $0x488] sm:$0xff]
    %v473 = vld [vmem:[#allocation7 + $0x490] sm:$0xff]
    %v474 = vld [vmem:[#allocation7 + $0x498] sm:$0xff]
    %v475 = vld [vmem:[#allocation7 + $0x4a0] sm:$0xff]
    %v476 = vld [vmem:[#allocation7 + $0x4a8] sm:$0xff]
    %v477 = vld [vmem:[#allocation7 + $0x4b0] sm:$0xff]
    %v478 = vld [vmem:[#allocation7 + $0x4b8] sm:$0xff]
    %v479 = vld [vmem:[#allocation7 + $0x4c0] sm:$0xff]
    %v480 = vld [vmem:[#allocation7 + $0x4c8] sm:$0xff]
    %v481 = vld [vmem:[#allocation7 + $0x4d0] sm:$0xff]
    %v482 = vld [vmem:[#allocation7 + $0x4d8] sm:$0xff]
    %v483 = vld [vmem:[#allocation7 + $0x4e0] sm:$0xff]
    %v484 = vld [vmem:[#allocation7 + $0x4e8] sm:$0xff]
    %v485 = vld [vmem:[#allocation7 + $0x4f0] sm:$0xff]
    %v486 = vld [vmem:[#allocation7 + $0x4f8] sm:$0xff]
    %v487 = vld [vmem:[#allocation7 + $0x500] sm:$0xff]
    %v488 = vld [vmem:[#allocation7 + $0x508] sm:$0xff]
    %v489 = vld [vmem:[#allocation7 + $0x510] sm:$0xff]
    %v490 = vld [vmem:[#allocation7 + $0x518] sm:$0xff]
    %v491 = vld [vmem:[#allocation7 + $0x520] sm:$0xff]
    %v492 = vld [vmem:[#allocation7 + $0x528] sm:$0xff]
    %v493 = vld [vmem:[#allocation7 + $0x530] sm:$0xff]
    %v494 = vld [vmem:[#allocation7 + $0x538] sm:$0xff]
    %v495 = vld [vmem:[#allocation7 + $0x540] sm:$0xff]
    %v496 = vld [vmem:[#allocation7 + $0x548] sm:$0xff]
    %v497 = vld [vmem:[#allocation7 + $0x550] sm:$0xff]
    %v498 = vld [vmem:[#allocation7 + $0x558] sm:$0xff]
    %v499 = vld [vmem:[#allocation7 + $0x560] sm:$0xff]
    %v500 = vld [vmem:[#allocation7 + $0x568] sm:$0xff]
    %v501 = vld [vmem:[#allocation7 + $0x570] sm:$0xff]
    %v502 = vld [vmem:[#allocation7 + $0x578] sm:$0xff]
    %v503 = vld [vmem:[#allocation7 + $0x580] sm:$0xff]
    %v504 = vld [vmem:[#allocation7 + $0x588] sm:$0xff]
    %v505 = vld [vmem:[#allocation7 + $0x590] sm:$0xff]
    %v506 = vld [vmem:[#allocation7 + $0x598] sm:$0xff]
    %v507 = vld [vmem:[#allocation7 + $0x5a0] sm:$0xff]
    %v508 = vld [vmem:[#allocation7 + $0x5a8] sm:$0xff]
    %v509 = vld [vmem:[#allocation7 + $0x5b0] sm:$0xff]
    %v510 = vld [vmem:[#allocation7 + $0x5b8] sm:$0xff]
    %v511 = vld [vmem:[#allocation7 + $0x5c0] sm:$0xff]
    %v512 = vld [vmem:[#allocation7 + $0x5c8] sm:$0xff]
    %v513 = vld [vmem:[#allocation7 + $0x5d0] sm:$0xff]
    %v514 = vld [vmem:[#allocation7 + $0x5d8] sm:$0xff]
    %v515 = vld [vmem:[#allocation7 + $0x5e0] sm:$0xff]
    %v516 = vld [vmem:[#allocation7 + $0x5e8] sm:$0xff]
    %v517 = vld [vmem:[#allocation7 + $0x5f0] sm:$0xff]
    %v518 = vld [vmem:[#allocation7 + $0x5f8] sm:$0xff]
    %v519 = vld [vmem:[#allocation7 + $0x600] sm:$0xff]
    %v520 = vld [vmem:[#allocation7 + $0x608] sm:$0xff]
    %v521 = vld [vmem:[#allocation7 + $0x610] sm:$0xff]
    %v522 = vld [vmem:[#allocation7 + $0x618] sm:$0xff]
    %v523 = vld [vmem:[#allocation7 + $0x620] sm:$0xff]
    %v524 = vld [vmem:[#allocation7 + $0x628] sm:$0xff]
    %v525 = vld [vmem:[#allocation7 + $0x630] sm:$0xff]
    %v526 = vld [vmem:[#allocation7 + $0x638] sm:$0xff]
    %v527 = vld [vmem:[#allocation7 + $0x640] sm:$0xff]
    %v528 = vld [vmem:[#allocation7 + $0x648] sm:$0xff]
    %v529 = vld [vmem:[#allocation7 + $0x650] sm:$0xff]
    %v530 = vld [vmem:[#allocation7 + $0x658] sm:$0xff]
    %v531 = vld [vmem:[#allocation7 + $0x660] sm:$0xff]
    %v532 = vld [vmem:[#allocation7 + $0x668] sm:$0xff]
    %v533 = vld [vmem:[#allocation7 + $0x670] sm:$0xff]
    %v534 = vld [vmem:[#allocation7 + $0x678] sm:$0xff]
    %v535 = vld [vmem:[#allocation7 + $0x680] sm:$0xff]
    %v536 = vld [vmem:[#allocation7 + $0x688] sm:$0xff]
    %v537 = vld [vmem:[#allocation7 + $0x690] sm:$0xff]
    %v538 = vld [vmem:[#allocation7 + $0x698] sm:$0xff]
    %v539 = vld [vmem:[#allocation7 + $0x6a0] sm:$0xff]
    %v540 = vld [vmem:[#allocation7 + $0x6a8] sm:$0xff]
    %v541 = vld [vmem:[#allocation7 + $0x6b0] sm:$0xff]
    %v542 = vld [vmem:[#allocation7 + $0x6b8] sm:$0xff]
    %v543 = vld [vmem:[#allocation7 + $0x6c0] sm:$0xff]
    %v544 = vld [vmem:[#allocation7 + $0x6c8] sm:$0xff]
    %v545 = vld [vmem:[#allocation7 + $0x6d0] sm:$0xff]
    %v546 = vld [vmem:[#allocation7 + $0x6d8] sm:$0xff]
    %v547 = vld [vmem:[#allocation7 + $0x6e0] sm:$0xff]
    %v548 = vld [vmem:[#allocation7 + $0x6e8] sm:$0xff]
    %v549 = vld [vmem:[#allocation7 + $0x6f0] sm:$0xff]
    %v550 = vld [vmem:[#allocation7 + $0x6f8] sm:$0xff]
    %v551 = vld [vmem:[#allocation7 + $0x700] sm:$0xff]
    %v552 = vld [vmem:[#allocation7 + $0x708] sm:$0xff]
    %v553 = vld [vmem:[#allocation7 + $0x710] sm:$0xff]
    %v554 = vld [vmem:[#allocation7 + $0x718] sm:$0xff]
    %v555 = vld [vmem:[#allocation7 + $0x720] sm:$0xff]
    %v556 = vld [vmem:[#allocation7 + $0x728] sm:$0xff]
    %v557 = vld [vmem:[#allocation7 + $0x730] sm:$0xff]
    %v558 = vld [vmem:[#allocation7 + $0x738] sm:$0xff]
    %v559 = vld [vmem:[#allocation7 + $0x740] sm:$0xff]
    %v560 = vld [vmem:[#allocation7 + $0x748] sm:$0xff]
    %v561 = vld [vmem:[#allocation7 + $0x750] sm:$0xff]
    %v562 = vld [vmem:[#allocation7 + $0x758] sm:$0xff]
    %v563 = vld [vmem:[#allocation7 + $0x760] sm:$0xff]
    %v564 = vld [vmem:[#allocation7 + $0x768] sm:$0xff]
    %v565 = vld [vmem:[#allocation7 + $0x770] sm:$0xff]
    %v566 = vld [vmem:[#allocation7 + $0x778] sm:$0xff]
    %v567 = vld [vmem:[#allocation7 + $0x780] sm:$0xff]
    %v568 = vld [vmem:[#allocation7 + $0x788] sm:$0xff]
    %v569 = vld [vmem:[#allocation7 + $0x790] sm:$0xff]
    %v570 = vld [vmem:[#allocation7 + $0x798] sm:$0xff]
    %v571 = vld [vmem:[#allocation7 + $0x7a0] sm:$0xff]
    %v572 = vld [vmem:[#allocation7 + $0x7a8] sm:$0xff]
    %v573 = vld [vmem:[#allocation7 + $0x7b0] sm:$0xff]
    %v574 = vld [vmem:[#allocation7 + $0x7b8] sm:$0xff]
    %v575 = vld [vmem:[#allocation7 + $0x7c0] sm:$0xff]
    %v576 = vld [vmem:[#allocation7 + $0x7c8] sm:$0xff]
    %v577 = vld [vmem:[#allocation7 + $0x7d0] sm:$0xff]
    %v578 = vld [vmem:[#allocation7 + $0x7d8] sm:$0xff]
    %v579 = vld [vmem:[#allocation7 + $0x7e0] sm:$0xff]
    %v580 = vld [vmem:[#allocation7 + $0x7e8] sm:$0xff]
    %v581 = vld [vmem:[#allocation7 + $0x7f0] sm:$0xff]
    %v582 = vld [vmem:[#allocation7 + $0x7f8] sm:$0xff]
    %v584 = vlaneseq
    %v585 = vshrl.u32 %v584, 7
    %v586 = vsub.s32 0, %v585
    %v587 = vrot.slane %v91, %v586
    %v588 = vlaneseq
    %v589 = vshrl.u32 %v588, 7
    %v590 = vsub.s32 1, %v589
    %v591 = vrot.slane %v91, %v590
    %v592 = vlaneseq
    %v593 = vshrl.u32 %v592, 7
    %v594 = vsub.s32 2, %v593
    %v595 = vrot.slane %v91, %v594
    %v596 = vlaneseq
    %v597 = vshrl.u32 %v596, 7
    %v598 = vsub.s32 3, %v597
    %v599 = vrot.slane %v91, %v598
    %604 = vmatprep.subr.mxu0 %v328
    %605 = vmatpush1.msra.mxu0 %v327
    %606 = vmatprep.subr.mxu0 %v332
    %607 = vmatpush1.msra.mxu0 %v331
    %608 = vmatprep.subr.mxu0 %v336
    %609 = vmatpush1.msra.mxu0 %v335
    %610 = vmatprep.subr.mxu0 %v340
    %611 = vmatpush1.msra.mxu0 %v339
    %612 = vmatprep.subr.mxu0 %v344
    %613 = vmatpush1.msra.mxu0 %v343
    %614 = vmatprep.subr.mxu0 %v348
    %615 = vmatpush1.msra.mxu0 %v347
    %616 = vmatprep.subr.mxu0 %v352
    %617 = vmatpush1.msra.mxu0 %v351
    %618 = vmatprep.subr.mxu0 %v356
    %619 = vmatpush1.msra.mxu0 %v355
    %620 = vmatprep.subr.mxu0 %v360
    %621 = vmatpush1.msra.mxu0 %v359
    %622 = vmatprep.subr.mxu0 %v364
    %623 = vmatpush1.msra.mxu0 %v363
    %624 = vmatprep.subr.mxu0 %v368
    %625 = vmatpush1.msra.mxu0 %v367
    %626 = vmatprep.subr.mxu0 %v372
    %627 = vmatpush1.msra.mxu0 %v371
    %628 = vmatprep.subr.mxu0 %v376
    %629 = vmatpush1.msra.mxu0 %v375
    %630 = vmatprep.subr.mxu0 %v380
    %631 = vmatpush1.msra.mxu0 %v379
    %632 = vmatprep.subr.mxu0 %v384
    %633 = vmatpush1.msra.mxu0 %v383
    %634 = vmatprep.subr.mxu0 %v388
    %635 = vmatpush1.msra.mxu0 %v387
    %636 = vmatprep.subr.mxu0 %v392
    %637 = vmatpush1.msra.mxu0 %v391
    %638 = vmatprep.subr.mxu0 %v396
    %639 = vmatpush1.msra.mxu0 %v395
    %640 = vmatprep.subr.mxu0 %v400
    %641 = vmatpush1.msra.mxu0 %v399
    %642 = vmatprep.subr.mxu0 %v404
    %643 = vmatpush1.msra.mxu0 %v403
    %644 = vmatprep.subr.mxu0 %v408
    %645 = vmatpush1.msra.mxu0 %v407
    %646 = vmatprep.subr.mxu0 %v412
    %647 = vmatpush1.msra.mxu0 %v411
    %648 = vmatprep.subr.mxu0 %v416
    %649 = vmatpush1.msra.mxu0 %v415
    %650 = vmatprep.subr.mxu0 %v420
    %651 = vmatpush1.msra.mxu0 %v419
    %652 = vmatprep.subr.mxu0 %v424
    %653 = vmatpush1.msra.mxu0 %v423
    %654 = vmatprep.subr.mxu0 %v428
    %655 = vmatpush1.msra.mxu0 %v427
    %656 = vmatprep.subr.mxu0 %v432
    %657 = vmatpush1.msra.mxu0 %v431
    %658 = vmatprep.subr.mxu0 %v436
    %659 = vmatpush1.msra.mxu0 %v435
    %660 = vmatprep.subr.mxu0 %v440
    %661 = vmatpush1.msra.mxu0 %v439
    %662 = vmatprep.subr.mxu0 %v444
    %663 = vmatpush1.msra.mxu0 %v443
    %664 = vmatprep.subr.mxu0 %v448
    %665 = vmatpush1.msra.mxu0 %v447
    %666 = vmatprep.subr.mxu0 %v452
    %667 = vmatpush1.msra.mxu0 %v451
    %668 = vmatprep.mubr.f32.mxu0 %v324
    %669 = vmatmul.mubr.f32.gmra.mrb[0].mxu0 %v323
    %v670 = vpop.f32.mrb[0].mxu0
    %v671 = vadd.f32 %v587, %v670
    %v672 = vpop.f32.mrb[0].mxu0
    %v673 = vadd.f32 %v591, %v672
    %674 = vdwg.mxu0
    %675 = vmatprep.subr.mxu0 %v456
    %676 = vmatpush1.msra.mxu0 %v455
    %677 = vmatprep.subr.mxu0 %v460
    %678 = vmatpush1.msra.mxu0 %v459
    %679 = vmatprep.subr.mxu0 %v464
    %680 = vmatpush1.msra.mxu0 %v463
    %681 = vmatprep.subr.mxu0 %v468
    %682 = vmatpush1.msra.mxu0 %v467
    %683 = vmatprep.subr.mxu0 %v472
    %684 = vmatpush1.msra.mxu0 %v471
    %685 = vmatprep.subr.mxu0 %v476
    %686 = vmatpush1.msra.mxu0 %v475
    %687 = vmatprep.subr.mxu0 %v480
    %688 = vmatpush1.msra.mxu0 %v479
    %689 = vmatprep.subr.mxu0 %v484
    %690 = vmatpush1.msra.mxu0 %v483
    %691 = vmatprep.subr.mxu0 %v488
    %692 = vmatpush1.msra.mxu0 %v487
    %693 = vmatprep.subr.mxu0 %v492
    %694 = vmatpush1.msra.mxu0 %v491
    %695 = vmatprep.subr.mxu0 %v496
    %696 = vmatpush1.msra.mxu0 %v495
    %697 = vmatprep.subr.mxu0 %v500
    %698 = vmatpush1.msra.mxu0 %v499
    %699 = vmatprep.subr.mxu0 %v504
    %700 = vmatpush1.msra.mxu0 %v503
    %701 = vmatprep.subr.mxu0 %v508
    %702 = vmatpush1.msra.mxu0 %v507
    %703 = vmatprep.subr.mxu0 %v512
    %704 = vmatpush1.msra.mxu0 %v511
    %705 = vmatprep.subr.mxu0 %v516
    %706 = vmatpush1.msra.mxu0 %v515
    %707 = vmatprep.subr.mxu0 %v520
    %708 = vmatpush1.msra.mxu0 %v519
    %709 = vmatprep.subr.mxu0 %v524
    %710 = vmatpush1.msra.mxu0 %v523
    %711 = vmatprep.subr.mxu0 %v528
    %712 = vmatpush1.msra.mxu0 %v527
    %713 = vmatprep.subr.mxu0 %v532
    %714 = vmatpush1.msra.mxu0 %v531
    %715 = vmatprep.subr.mxu0 %v536
    %716 = vmatpush1.msra.mxu0 %v535
    %717 = vmatprep.subr.mxu0 %v540
    %718 = vmatpush1.msra.mxu0 %v539
    %719 = vmatprep.subr.mxu0 %v544
    %720 = vmatpush1.msra.mxu0 %v543
    %721 = vmatprep.subr.mxu0 %v548
    %722 = vmatpush1.msra.mxu0 %v547
    %723 = vmatprep.subr.mxu0 %v552
    %724 = vmatpush1.msra.mxu0 %v551
    %725 = vmatprep.subr.mxu0 %v556
    %726 = vmatpush1.msra.mxu0 %v555
    %727 = vmatprep.subr.mxu0 %v560
    %728 = vmatpush1.msra.mxu0 %v559
    %729 = vmatprep.subr.mxu0 %v564
    %730 = vmatpush1.msra.mxu0 %v563
    %731 = vmatprep.subr.mxu0 %v568
    %732 = vmatpush1.msra.mxu0 %v567
    %733 = vmatprep.subr.mxu0 %v572
    %734 = vmatpush1.msra.mxu0 %v571
    %735 = vmatprep.subr.mxu0 %v576
    %736 = vmatpush1.msra.mxu0 %v575
    %737 = vmatprep.subr.mxu0 %v580
    %738 = vmatpush1.msra.mxu0 %v579
    %739 = vmatprep.mubr.f32.mxu0 %v326
    %740 = vmatmul.mubr.f32.gmra.mrb[0].mxu0 %v325
    %v741 = vpop.f32.mrb[0].mxu0
    %v742 = vadd.f32 %v671, %v741
    %v743 = vpop.f32.mrb[0].mxu0
    %v744 = vadd.f32 %v673, %v743
    %745 = vdwg.mxu0
    %746 = vmatprep.subr.mxu0 %v330
    %747 = vmatpush1.msra.mxu0 %v329
    %748 = vmatprep.subr.mxu0 %v334
    %749 = vmatpush1.msra.mxu0 %v333
    %750 = vmatprep.subr.mxu0 %v338
    %751 = vmatpush1.msra.mxu0 %v337
    %752 = vmatprep.subr.mxu0 %v342
    %753 = vmatpush1.msra.mxu0 %v341
    %754 = vmatprep.subr.mxu0 %v346
    %755 = vmatpush1.msra.mxu0 %v345
    %756 = vmatprep.subr.mxu0 %v350
    %757 = vmatpush1.msra.mxu0 %v349
    %758 = vmatprep.subr.mxu0 %v354
    %759 = vmatpush1.msra.mxu0 %v353
    %760 = vmatprep.subr.mxu0 %v358
    %761 = vmatpush1.msra.mxu0 %v357
    %762 = vmatprep.subr.mxu0 %v362
    %763 = vmatpush1.msra.mxu0 %v361
    %764 = vmatprep.subr.mxu0 %v366
    %765 = vmatpush1.msra.mxu0 %v365
    %766 = vmatprep.subr.mxu0 %v370
    %767 = vmatpush1.msra.mxu0 %v369
    %768 = vmatprep.subr.mxu0 %v374
    %769 = vmatpush1.msra.mxu0 %v373
    %770 = vmatprep.subr.mxu0 %v378
    %771 = vmatpush1.msra.mxu0 %v377
    %772 = vmatprep.subr.mxu0 %v382
    %773 = vmatpush1.msra.mxu0 %v381
    %774 = vmatprep.subr.mxu0 %v386
    %775 = vmatpush1.msra.mxu0 %v385
    %776 = vmatprep.subr.mxu0 %v390
    %777 = vmatpush1.msra.mxu0 %v389
    %778 = vmatprep.subr.mxu0 %v394
    %779 = vmatpush1.msra.mxu0 %v393
    %780 = vmatprep.subr.mxu0 %v398
    %781 = vmatpush1.msra.mxu0 %v397
    %782 = vmatprep.subr.mxu0 %v402
    %783 = vmatpush1.msra.mxu0 %v401
    %784 = vmatprep.subr.mxu0 %v406
    %785 = vmatpush1.msra.mxu0 %v405
    %786 = vmatprep.subr.mxu0 %v410
    %787 = vmatpush1.msra.mxu0 %v409
    %788 = vmatprep.subr.mxu0 %v414
    %789 = vmatpush1.msra.mxu0 %v413
    %790 = vmatprep.subr.mxu0 %v418
    %791 = vmatpush1.msra.mxu0 %v417
    %792 = vmatprep.subr.mxu0 %v422
    %793 = vmatpush1.msra.mxu0 %v421
    %794 = vmatprep.subr.mxu0 %v426
    %795 = vmatpush1.msra.mxu0 %v425
    %796 = vmatprep.subr.mxu0 %v430
    %797 = vmatpush1.msra.mxu0 %v429
    %798 = vmatprep.subr.mxu0 %v434
    %799 = vmatpush1.msra.mxu0 %v433
    %800 = vmatprep.subr.mxu0 %v438
    %801 = vmatpush1.msra.mxu0 %v437
    %802 = vmatprep.subr.mxu0 %v442
    %803 = vmatpush1.msra.mxu0 %v441
    %804 = vmatprep.subr.mxu0 %v446
    %805 = vmatpush1.msra.mxu0 %v445
    %806 = vmatprep.subr.mxu0 %v450
    %807 = vmatpush1.msra.mxu0 %v449
    %808 = vmatprep.subr.mxu0 %v454
    %809 = vmatpush1.msra.mxu0 %v453
    %810 = vmatprep.mubr.f32.mxu0 %v324
    %811 = vmatmul.mubr.f32.gmra.mrb[0].mxu0 %v323
    %v812 = vpop.f32.mrb[0].mxu0
    %v813 = vadd.f32 %v595, %v812
    %v814 = vpop.f32.mrb[0].mxu0
    %v815 = vadd.f32 %v599, %v814
    %816 = vdwg.mxu0
    %817 = vmatprep.subr.mxu0 %v458
    %818 = vmatpush1.msra.mxu0 %v457
    %819 = vmatprep.subr.mxu0 %v462
    %820 = vmatpush1.msra.mxu0 %v461
    %821 = vmatprep.subr.mxu0 %v466
    %822 = vmatpush1.msra.mxu0 %v465
    %823 = vmatprep.subr.mxu0 %v470
    %824 = vmatpush1.msra.mxu0 %v469
    %825 = vmatprep.subr.mxu0 %v474
    %826 = vmatpush1.msra.mxu0 %v473
    %827 = vmatprep.subr.mxu0 %v478
    %828 = vmatpush1.msra.mxu0 %v477
    %829 = vmatprep.subr.mxu0 %v482
    %830 = vmatpush1.msra.mxu0 %v481
    %831 = vmatprep.subr.mxu0 %v486
    %832 = vmatpush1.msra.mxu0 %v485
    %833 = vmatprep.subr.mxu0 %v490
    %834 = vmatpush1.msra.mxu0 %v489
    %835 = vmatprep.subr.mxu0 %v494
    %836 = vmatpush1.msra.mxu0 %v493
    %837 = vmatprep.subr.mxu0 %v498
    %838 = vmatpush1.msra.mxu0 %v497
    %839 = vmatprep.subr.mxu0 %v502
    %840 = vmatpush1.msra.mxu0 %v501
    %841 = vmatprep.subr.mxu0 %v506
    %842 = vmatpush1.msra.mxu0 %v505
    %843 = vmatprep.subr.mxu0 %v510
    %844 = vmatpush1.msra.mxu0 %v509
    %845 = vmatprep.subr.mxu0 %v514
    %846 = vmatpush1.msra.mxu0 %v513
    %847 = vmatprep.subr.mxu0 %v518
    %848 = vmatpush1.msra.mxu0 %v517
    %849 = vmatprep.subr.mxu0 %v522
    %850 = vmatpush1.msra.mxu0 %v521
    %851 = vmatprep.subr.mxu0 %v526
    %852 = vmatpush1.msra.mxu0 %v525
    %853 = vmatprep.subr.mxu0 %v530
    %854 = vmatpush1.msra.mxu0 %v529
    %855 = vmatprep.subr.mxu0 %v534
    %856 = vmatpush1.msra.mxu0 %v533
    %857 = vmatprep.subr.mxu0 %v538
    %858 = vmatpush1.msra.mxu0 %v537
    %859 = vmatprep.subr.mxu0 %v542
    %860 = vmatpush1.msra.mxu0 %v541
    %861 = vmatprep.subr.mxu0 %v546
    %862 = vmatpush1.msra.mxu0 %v545
    %863 = vmatprep.subr.mxu0 %v550
    %864 = vmatpush1.msra.mxu0 %v549
    %865 = vmatprep.subr.mxu0 %v554
    %866 = vmatpush1.msra.mxu0 %v553
    %867 = vmatprep.subr.mxu0 %v558
    %868 = vmatpush1.msra.mxu0 %v557
    %869 = vmatprep.subr.mxu0 %v562
    %870 = vmatpush1.msra.mxu0 %v561
    %871 = vmatprep.subr.mxu0 %v566
    %872 = vmatpush1.msra.mxu0 %v565
    %873 = vmatprep.subr.mxu0 %v570
    %874 = vmatpush1.msra.mxu0 %v569
    %875 = vmatprep.subr.mxu0 %v574
    %876 = vmatpush1.msra.mxu0 %v573
    %877 = vmatprep.subr.mxu0 %v578
    %878 = vmatpush1.msra.mxu0 %v577
    %879 = vmatprep.subr.mxu0 %v582
    %880 = vmatpush1.msra.mxu0 %v581
    %881 = vmatprep.mubr.f32.mxu0 %v326
    %882 = vmatmul.mubr.f32.gmra.mrb[0].mxu0 %v325
    %v883 = vpop.f32.mrb[0].mxu0
    %v884 = vadd.f32 %v813, %v883
    %v885 = vpop.f32.mrb[0].mxu0
    %v886 = vadd.f32 %v815, %v885
    %887 = vdwg.mxu0
    %v888 = vrot.slane %v742, 4
    %v889 = vadd.f32 %v742, %v888
    %v890 = vrot.slane %v889, 2
    %v891 = vadd.f32 %v889, %v890
    %v892 = vrot.slane %v891, 1
    %v893 = vadd.f32 %v891, %v892
    %v894 = vrot.slane %v744, 4
    %v895 = vadd.f32 %v744, %v894
    %v896 = vrot.slane %v895, 2
    %v897 = vadd.f32 %v895, %v896
    %v898 = vrot.slane %v897, 1
    %v899 = vadd.f32 %v897, %v898
    %v900 = vrot.slane %v884, 4
    %v901 = vadd.f32 %v884, %v900
    %v902 = vrot.slane %v901, 2
    %v903 = vadd.f32 %v901, %v902
    %v904 = vrot.slane %v903, 1
    %v905 = vadd.f32 %v903, %v904
    %v906 = vrot.slane %v886, 4
    %v907 = vadd.f32 %v886, %v906
    %v908 = vrot.slane %v907, 2
    %v909 = vadd.f32 %v907, %v908
    %v910 = vrot.slane %v909, 1
    %v911 = vadd.f32 %v909, %v910
    %v912 = vmul.f32 %v893, 0.125
    %v913 = vmul.f32 %v899, 0.125
    %v914 = vmul.f32 %v905, 0.125
    %v915 = vmul.f32 %v911, 0.125
    %v916 = vmul.f32 %v742, %v742
    %v917 = vmul.f32 %v744, %v744
    %v918 = vmul.f32 %v884, %v884
    %v919 = vmul.f32 %v886, %v886
    %v920 = vrot.slane %v916, 4
    %v921 = vadd.f32 %v916, %v920
    %v922 = vrot.slane %v921, 2
    %v923 = vadd.f32 %v921, %v922
    %v924 = vrot.slane %v923, 1
    %v925 = vadd.f32 %v923, %v924
    %v926 = vrot.slane %v917, 4
    %v927 = vadd.f32 %v917, %v926
    %v928 = vrot.slane %v927, 2
    %v929 = vadd.f32 %v927, %v928
    %v930 = vrot.slane %v929, 1
    %v931 = vadd.f32 %v929, %v930
    %v932 = vrot.slane %v918, 4
    %v933 = vadd.f32 %v918, %v932
    %v934 = vrot.slane %v933, 2
    %v935 = vadd.f32 %v933, %v934
    %v936 = vrot.slane %v935, 1
    %v937 = vadd.f32 %v935, %v936
    %v938 = vrot.slane %v919, 4
    %v939 = vadd.f32 %v919, %v938
    %v940 = vrot.slane %v939, 2
    %v941 = vadd.f32 %v939, %v940
    %v942 = vrot.slane %v941, 1
    %v943 = vadd.f32 %v941, %v942
    %v944 = vmul.f32 %v925, 0.125
    %v945 = vmul.f32 %v931, 0.125
    %v946 = vmul.f32 %v937, 0.125
    %v947 = vmul.f32 %v943, 0.125
    %v948 = vmul.f32 %v912, %v912
    %v949 = vmul.f32 %v913, %v913
    %v950 = vmul.f32 %v914, %v914
    %v951 = vmul.f32 %v915, %v915
    %v952 = vsub.f32 %v944, %v948
    %v953 = vsub.f32 %v945, %v949
    %v954 = vsub.f32 %v946, %v950
    %v955 = vsub.f32 %v947, %v951
    %v956 = vmax.f32 %v952, 0.0
    %v957 = vmax.f32 %v953, 0.0
    %v958 = vmax.f32 %v954, 0.0
    %v959 = vmax.f32 %v955, 0.0
    %v960 = vadd.f32 %v956, 1e-05
    %v961 = vadd.f32 %v957, 1e-05
    %v962 = vadd.f32 %v958, 1e-05
    %v963 = vadd.f32 %v959, 1e-05
    %v964 = vrsqrt.pop %v960
    %v965 = vrsqrt.pop %v961
    %v966 = vrsqrt.pop %v962
    %v967 = vrsqrt.pop %v963
    %v972 = vcombine.low %v964, %v965
    %v973 = vcombine.low %v966, %v967
    %v975 = vunpack.c.l.s4 1966171168
    %v976 = vunpack.c.0.s8 %v975
    %v977 = vlaneseq
    %v978 = vshrl.u32 %v977, 7
    %v979 = vsub.s32 %v976, %v978
    %v980 = vrot.slane %v972, %v979
    %v982 = vunpack.c.l.s4 1966171168
    %v983 = vunpack.c.0.s8 %v982
    %v984 = vlaneseq
    %v985 = vshrl.u32 %v984, 7
    %v986 = vsub.s32 %v983, %v985
    %v987 = vrot.slane %v973, %v986
    %v988 = vcombine.low %v980, %v987
    %v990 = vunpack.c.l.s4 1966171168
    %v991 = vunpack.c.0.s8 %v990
    %v992 = vlaneseq
    %v993 = vshrl.u32 %v992, 7
    %v994 = vsub.s32 %v991, %v993
    %v995 = vrot.slane %v988, %v994
    %v997 = vmul.f32 %v93, %v995
    %v999 = vlaneseq
    %v1000 = vshrl.u32 %v999, 7
    %v1001 = vsub.s32 0, %v1000
    %v1002 = vrot.slane %v997, %v1001
    %v1003 = vlaneseq
    %v1004 = vshrl.u32 %v1003, 7
    %v1005 = vsub.s32 1, %v1004
    %v1006 = vrot.slane %v997, %v1005
    %v1007 = vlaneseq
    %v1008 = vshrl.u32 %v1007, 7
    %v1009 = vsub.s32 2, %v1008
    %v1010 = vrot.slane %v997, %v1009
    %v1011 = vlaneseq
    %v1012 = vshrl.u32 %v1011, 7
    %v1013 = vsub.s32 3, %v1012
    %v1014 = vrot.slane %v997, %v1013
    %v1019 = vmul.f32 %v912, %v1002
    %v1020 = vmul.f32 %v913, %v1006
    %v1021 = vmul.f32 %v914, %v1010
    %v1022 = vmul.f32 %v915, %v1014
    %v1027 = vcombine.low %v1019, %v1020
    %v1028 = vcombine.low %v1021, %v1022
    %v1030 = vunpack.c.l.s4 1966171168
    %v1031 = vunpack.c.0.s8 %v1030
    %v1032 = vlaneseq
    %v1033 = vshrl.u32 %v1032, 7
    %v1034 = vsub.s32 %v1031, %v1033
    %v1035 = vrot.slane %v1027, %v1034
    %v1037 = vunpack.c.l.s4 1966171168
    %v1038 = vunpack.c.0.s8 %v1037
    %v1039 = vlaneseq
    %v1040 = vshrl.u32 %v1039, 7
    %v1041 = vsub.s32 %v1038, %v1040
    %v1042 = vrot.slane %v1028, %v1041
    %v1043 = vcombine.low %v1035, %v1042
    %v1045 = vunpack.c.l.s4 1966171168
    %v1046 = vunpack.c.0.s8 %v1045
    %v1047 = vlaneseq
    %v1048 = vshrl.u32 %v1047, 7
    %v1049 = vsub.s32 %v1046, %v1048
    %v1050 = vrot.slane %v1043, %v1049
    %v1052 = vsub.f32 %v95, %v1050
    %v1053 = vmul.f32 %v742, %v1002
    %v1054 = vmul.f32 %v744, %v1006
    %v1055 = vmul.f32 %v884, %v1010
    %v1056 = vmul.f32 %v886, %v1014
    %v1058 = vlaneseq
    %v1059 = vshrl.u32 %v1058, 7
    %v1060 = vsub.s32 0, %v1059
    %v1061 = vrot.slane %v1052, %v1060
    %v1062 = vlaneseq
    %v1063 = vshrl.u32 %v1062, 7
    %v1064 = vsub.s32 1, %v1063
    %v1065 = vrot.slane %v1052, %v1064
    %v1066 = vlaneseq
    %v1067 = vshrl.u32 %v1066, 7
    %v1068 = vsub.s32 2, %v1067
    %v1069 = vrot.slane %v1052, %v1068
    %v1070 = vlaneseq
    %v1071 = vshrl.u32 %v1070, 7
    %v1072 = vsub.s32 3, %v1071
    %v1073 = vrot.slane %v1052, %v1072
    %v1078 = vadd.f32 %v1053, %v1061
    %v1079 = vadd.f32 %v1054, %v1065
    %v1080 = vadd.f32 %v1055, %v1069
    %v1081 = vadd.f32 %v1056, %v1073
    %v1082 = vmax.f32 %v1078, 0.0
    %v1083 = vmax.f32 %v1079, 0.0
    %v1084 = vmax.f32 %v1080, 0.0
    %v1085 = vmax.f32 %v1081, 0.0
    %v1086 = vld [vmem:[#allocation8] sm:$0xff]
    %v1087 = vld [vmem:[#allocation8 + $0x8] sm:$0xff]
    %v1088 = vld [vmem:[#allocation8 + $0x10] sm:$0xff]
    %v1089 = vld [vmem:[#allocation8 + $0x18] sm:$0xff]
    %v1090 = vld [vmem:[#allocation8 + $0x20] sm:$0xff]
    %v1091 = vld [vmem:[#allocation8 + $0x28] sm:$0xff]
    %v1092 = vld [vmem:[#allocation8 + $0x30] sm:$0xff]
    %v1093 = vld [vmem:[#allocation8 + $0x38] sm:$0xff]
    %v1094 = vld [vmem:[#allocation8 + $0x40] sm:$0xff]
    %v1095 = vld [vmem:[#allocation8 + $0x48] sm:$0xff]
    %v1096 = vld [vmem:[#allocation8 + $0x50] sm:$0xff]
    %v1097 = vld [vmem:[#allocation8 + $0x58] sm:$0xff]
    %v1098 = vld [vmem:[#allocation8 + $0x60] sm:$0xff]
    %v1099 = vld [vmem:[#allocation8 + $0x68] sm:$0xff]
    %v1100 = vld [vmem:[#allocation8 + $0x70] sm:$0xff]
    %v1101 = vld [vmem:[#allocation8 + $0x78] sm:$0xff]
    %v1102 = vld [vmem:[#allocation8 + $0x80] sm:$0xff]
    %v1103 = vld [vmem:[#allocation8 + $0x88] sm:$0xff]
    %v1104 = vld [vmem:[#allocation8 + $0x90] sm:$0xff]
    %v1105 = vld [vmem:[#allocation8 + $0x98] sm:$0xff]
    %v1106 = vld [vmem:[#allocation8 + $0xa0] sm:$0xff]
    %v1107 = vld [vmem:[#allocation8 + $0xa8] sm:$0xff]
    %v1108 = vld [vmem:[#allocation8 + $0xb0] sm:$0xff]
    %v1109 = vld [vmem:[#allocation8 + $0xb8] sm:$0xff]
    %v1110 = vld [vmem:[#allocation8 + $0xc0] sm:$0xff]
    %v1111 = vld [vmem:[#allocation8 + $0xc8] sm:$0xff]
    %v1112 = vld [vmem:[#allocation8 + $0xd0] sm:$0xff]
    %v1113 = vld [vmem:[#allocation8 + $0xd8] sm:$0xff]
    %v1114 = vld [vmem:[#allocation8 + $0xe0] sm:$0xff]
    %v1115 = vld [vmem:[#allocation8 + $0xe8] sm:$0xff]
    %v1116 = vld [vmem:[#allocation8 + $0xf0] sm:$0xff]
    %v1117 = vld [vmem:[#allocation8 + $0xf8] sm:$0xff]
    %v1118 = vld [vmem:[#allocation8 + $0x100] sm:$0xff]
    %v1119 = vld [vmem:[#allocation8 + $0x108] sm:$0xff]
    %v1120 = vld [vmem:[#allocation8 + $0x110] sm:$0xff]
    %v1121 = vld [vmem:[#allocation8 + $0x118] sm:$0xff]
    %v1122 = vld [vmem:[#allocation8 + $0x120] sm:$0xff]
    %v1123 = vld [vmem:[#allocation8 + $0x128] sm:$0xff]
    %v1124 = vld [vmem:[#allocation8 + $0x130] sm:$0xff]
    %v1125 = vld [vmem:[#allocation8 + $0x138] sm:$0xff]
    %v1126 = vld [vmem:[#allocation8 + $0x140] sm:$0xff]
    %v1127 = vld [vmem:[#allocation8 + $0x148] sm:$0xff]
    %v1128 = vld [vmem:[#allocation8 + $0x150] sm:$0xff]
    %v1129 = vld [vmem:[#allocation8 + $0x158] sm:$0xff]
    %v1130 = vld [vmem:[#allocation8 + $0x160] sm:$0xff]
    %v1131 = vld [vmem:[#allocation8 + $0x168] sm:$0xff]
    %v1132 = vld [vmem:[#allocation8 + $0x170] sm:$0xff]
    %v1133 = vld [vmem:[#allocation8 + $0x178] sm:$0xff]
    %v1134 = vld [vmem:[#allocation8 + $0x180] sm:$0xff]
    %v1135 = vld [vmem:[#allocation8 + $0x188] sm:$0xff]
    %v1136 = vld [vmem:[#allocation8 + $0x190] sm:$0xff]
    %v1137 = vld [vmem:[#allocation8 + $0x198] sm:$0xff]
    %v1138 = vld [vmem:[#allocation8 + $0x1a0] sm:$0xff]
    %v1139 = vld [vmem:[#allocation8 + $0x1a8] sm:$0xff]
    %v1140 = vld [vmem:[#allocation8 + $0x1b0] sm:$0xff]
    %v1141 = vld [vmem:[#allocation8 + $0x1b8] sm:$0xff]
    %v1142 = vld [vmem:[#allocation8 + $0x1c0] sm:$0xff]
    %v1143 = vld [vmem:[#allocation8 + $0x1c8] sm:$0xff]
    %v1144 = vld [vmem:[#allocation8 + $0x1d0] sm:$0xff]
    %v1145 = vld [vmem:[#allocation8 + $0x1d8] sm:$0xff]
    %v1146 = vld [vmem:[#allocation8 + $0x1e0] sm:$0xff]
    %v1147 = vld [vmem:[#allocation8 + $0x1e8] sm:$0xff]
    %v1148 = vld [vmem:[#allocation8 + $0x1f0] sm:$0xff]
    %v1149 = vld [vmem:[#allocation8 + $0x1f8] sm:$0xff]
    %v1150 = vld [vmem:[%s5] sm:$0x1]
    %v1152 = vlaneseq
    %v1153 = vshrl.u32 %v1152, 7
    %v1154 = vsub.s32 0, %v1153
    %v1155 = vrot.slane %v1150, %v1154
    %1157 = vmatprep.subr.mxu0 0.0
    %1158 = vmatpush1.msra.mxu0 %v1086
    %1159 = vmatprep.subr.mxu0 0.0
    %1160 = vmatpush1.msra.mxu0 %v1087
    %1161 = vmatprep.subr.mxu0 0.0
    %1162 = vmatpush1.msra.mxu0 %v1088
    %1163 = vmatprep.subr.mxu0 0.0
    %1164 = vmatpush1.msra.mxu0 %v1089
    %1165 = vmatprep.subr.mxu0 0.0
    %1166 = vmatpush1.msra.mxu0 %v1090
    %1167 = vmatprep.subr.mxu0 0.0
    %1168 = vmatpush1.msra.mxu0 %v1091
    %1169 = vmatprep.subr.mxu0 0.0
    %1170 = vmatpush1.msra.mxu0 %v1092
    %1171 = vmatprep.subr.mxu0 0.0
    %1172 = vmatpush1.msra.mxu0 %v1093
    %1173 = vmatprep.subr.mxu0 0.0
    %1174 = vmatpush1.msra.mxu0 %v1094
    %1175 = vmatprep.subr.mxu0 0.0
    %1176 = vmatpush1.msra.mxu0 %v1095
    %1177 = vmatprep.subr.mxu0 0.0
    %1178 = vmatpush1.msra.mxu0 %v1096
    %1179 = vmatprep.subr.mxu0 0.0
    %1180 = vmatpush1.msra.mxu0 %v1097
    %1181 = vmatprep.subr.mxu0 0.0
    %1182 = vmatpush1.msra.mxu0 %v1098
    %1183 = vmatprep.subr.mxu0 0.0
    %1184 = vmatpush1.msra.mxu0 %v1099
    %1185 = vmatprep.subr.mxu0 0.0
    %1186 = vmatpush1.msra.mxu0 %v1100
    %1187 = vmatprep.subr.mxu0 0.0
    %1188 = vmatpush1.msra.mxu0 %v1101
    %1189 = vmatprep.subr.mxu0 0.0
    %1190 = vmatpush1.msra.mxu0 %v1102
    %1191 = vmatprep.subr.mxu0 0.0
    %1192 = vmatpush1.msra.mxu0 %v1103
    %1193 = vmatprep.subr.mxu0 0.0
    %1194 = vmatpush1.msra.mxu0 %v1104
    %1195 = vmatprep.subr.mxu0 0.0
    %1196 = vmatpush1.msra.mxu0 %v1105
    %1197 = vmatprep.subr.mxu0 0.0
    %1198 = vmatpush1.msra.mxu0 %v1106
    %1199 = vmatprep.subr.mxu0 0.0
    %1200 = vmatpush1.msra.mxu0 %v1107
    %1201 = vmatprep.subr.mxu0 0.0
    %1202 = vmatpush1.msra.mxu0 %v1108
    %1203 = vmatprep.subr.mxu0 0.0
    %1204 = vmatpush1.msra.mxu0 %v1109
    %1205 = vmatprep.subr.mxu0 0.0
    %1206 = vmatpush1.msra.mxu0 %v1110
    %1207 = vmatprep.subr.mxu0 0.0
    %1208 = vmatpush1.msra.mxu0 %v1111
    %1209 = vmatprep.subr.mxu0 0.0
    %1210 = vmatpush1.msra.mxu0 %v1112
    %1211 = vmatprep.subr.mxu0 0.0
    %1212 = vmatpush1.msra.mxu0 %v1113
    %1213 = vmatprep.subr.mxu0 0.0
    %1214 = vmatpush1.msra.mxu0 %v1114
    %1215 = vmatprep.subr.mxu0 0.0
    %1216 = vmatpush1.msra.mxu0 %v1115
    %1217 = vmatprep.subr.mxu0 0.0
    %1218 = vmatpush1.msra.mxu0 %v1116
    %1219 = vmatprep.subr.mxu0 0.0
    %1220 = vmatpush1.msra.mxu0 %v1117
    %1221 = vmatprep.mubr.f32.mxu0 %v1083
    %1222 = vmatmul.mubr.f32.gmra.mrb[0].mxu0 %v1082
    %v1223 = vpop.f32.mrb[0].mxu0
    %v1224 = vadd.f32 %v1155, %v1223
    %v1225 = vpop.f32.mrb[0].mxu0
    %1226 = vdwg.mxu0
    %1227 = vmatprep.subr.mxu0 0.0
    %1228 = vmatpush1.msra.mxu0 %v1118
    %1229 = vmatprep.subr.mxu0 0.0
    %1230 = vmatpush1.msra.mxu0 %v1119
    %1231 = vmatprep.subr.mxu0 0.0
    %1232 = vmatpush1.msra.mxu0 %v1120
    %1233 = vmatprep.subr.mxu0 0.0
    %1234 = vmatpush1.msra.mxu0 %v1121
    %1235 = vmatprep.subr.mxu0 0.0
    %1236 = vmatpush1.msra.mxu0 %v1122
    %1237 = vmatprep.subr.mxu0 0.0
    %1238 = vmatpush1.msra.mxu0 %v1123
    %1239 = vmatprep.subr.mxu0 0.0
    %1240 = vmatpush1.msra.mxu0 %v1124
    %1241 = vmatprep.subr.mxu0 0.0
    %1242 = vmatpush1.msra.mxu0 %v1125
    %1243 = vmatprep.subr.mxu0 0.0
    %1244 = vmatpush1.msra.mxu0 %v1126
    %1245 = vmatprep.subr.mxu0 0.0
    %1246 = vmatpush1.msra.mxu0 %v1127
    %1247 = vmatprep.subr.mxu0 0.0
    %1248 = vmatpush1.msra.mxu0 %v1128
    %1249 = vmatprep.subr.mxu0 0.0
    %1250 = vmatpush1.msra.mxu0 %v1129
    %1251 = vmatprep.subr.mxu0 0.0
    %1252 = vmatpush1.msra.mxu0 %v1130
    %1253 = vmatprep.subr.mxu0 0.0
    %1254 = vmatpush1.msra.mxu0 %v1131
    %1255 = vmatprep.subr.mxu0 0.0
    %1256 = vmatpush1.msra.mxu0 %v1132
    %1257 = vmatprep.subr.mxu0 0.0
    %1258 = vmatpush1.msra.mxu0 %v1133
    %1259 = vmatprep.subr.mxu0 0.0
    %1260 = vmatpush1.msra.mxu0 %v1134
    %1261 = vmatprep.subr.mxu0 0.0
    %1262 = vmatpush1.msra.mxu0 %v1135
    %1263 = vmatprep.subr.mxu0 0.0
    %1264 = vmatpush1.msra.mxu0 %v1136
    %1265 = vmatprep.subr.mxu0 0.0
    %1266 = vmatpush1.msra.mxu0 %v1137
    %1267 = vmatprep.subr.mxu0 0.0
    %1268 = vmatpush1.msra.mxu0 %v1138
    %1269 = vmatprep.subr.mxu0 0.0
    %1270 = vmatpush1.msra.mxu0 %v1139
    %1271 = vmatprep.subr.mxu0 0.0
    %1272 = vmatpush1.msra.mxu0 %v1140
    %1273 = vmatprep.subr.mxu0 0.0
    %1274 = vmatpush1.msra.mxu0 %v1141
    %1275 = vmatprep.subr.mxu0 0.0
    %1276 = vmatpush1.msra.mxu0 %v1142
    %1277 = vmatprep.subr.mxu0 0.0
    %1278 = vmatpush1.msra.mxu0 %v1143
    %1279 = vmatprep.subr.mxu0 0.0
    %1280 = vmatpush1.msra.mxu0 %v1144
    %1281 = vmatprep.subr.mxu0 0.0
    %1282 = vmatpush1.msra.mxu0 %v1145
    %1283 = vmatprep.subr.mxu0 0.0
    %1284 = vmatpush1.msra.mxu0 %v1146
    %1285 = vmatprep.subr.mxu0 0.0
    %1286 = vmatpush1.msra.mxu0 %v1147
    %1287 = vmatprep.subr.mxu0 0.0
    %1288 = vmatpush1.msra.mxu0 %v1148
    %1289 = vmatprep.subr.mxu0 0.0
    %1290 = vmatpush1.msra.mxu0 %v1149
    %1291 = vmatprep.mubr.f32.mxu0 %v1085
    %1292 = vmatmul.mubr.f32.gmra.mrb[0].mxu0 %v1084
    %v1293 = vpop.f32.mrb[0].mxu0
    %v1294 = vadd.f32 %v1224, %v1293
    %v1295 = vpop.f32.mrb[0].mxu0
    %1296 = vdwg.mxu0
    %1297 = vst [vmem:[#allocation11] sm:$0xff] %v1294
    // Predicated region
    $region46: #{tpu_custom_call.1} parent=1 // pred_check
      _
    $region47: #{tpu_custom_call.1} parent=1 // pred_check_branch
      %1299 = sbr.rel (0) target = $region49
    $region48: #{tpu_custom_call.1} parent=1 // pred_region
      %s1301 = ssub.s32 128, 128
      %1302 = vsyncadd [#allocation4], %s1301
      %s1304 = sshll.u32 [#allocation11], 4
      %s1305 = int_to_ptr.vmem [resolvable:$true] %s1304
      %1307 = dma.vmem_to_hbm [thread:$0]  %s1305, 128, %s6, [#allocation4]
    $region49: #{tpu_custom_call.1} parent=1 // pred_fallthru
      _
    // Predicated region
    $region50: #{tpu_custom_call.1} parent=1 // pred_check
      _
    $region51: #{tpu_custom_call.1} parent=1 // pred_check_branch
      %1309 = sbr.rel (0) target = $region53
    $region52: #{tpu_custom_call.1} parent=1 // pred_region
      %1310 = dma.done [#allocation4], 128
    $region53: #{tpu_custom_call.1} parent=1 // pred_fallthru
      _
    %1311 = vsyncpa [#allocation3], 1
    %1312 = vsyncpa [#allocation6], 1
    %1313 = vsyncpa [#allocation9], 1
    %1314 = vsyncpa [#allocation4], 1

</llo_original>
